<compile_context>
chip_gen: v6e
topology: v6e:2x2x1
jax: 0.10.0
libtpu: 0.0.40
codegen_flags: <defaults>
</compile_context>

<pallas_src>
import math
from functools import partial

import jax
import jax.numpy as jnp
from jax import lax
from jax.experimental import pallas as pl
from jax.experimental.pallas import tpu as pltpu


_INV_SQRT2 = 1.0 / math.sqrt(2.0)
_SQRT_2_OVER_PI = math.sqrt(2.0 / math.pi)


def _round_up(x, m):
    return ((x + m - 1) // m) * m


def _mlp_kernel(x_ref, w1_ref, b1_ref, w2_ref, b2_ref, o_ref, acc_ref, *,
                gelu_approx):
    # x_ref:  (tm, C_in)      compute dtype (f32 or bf16)
    # w1_ref: (C_in, tk)      compute dtype;  b1_ref: (1, tk)    f32
    # w2_ref: (tk, C_out)     compute dtype;  b2_ref: (1, C_out) f32
    # o_ref:  (tm, C_out)     output dtype
    # acc_ref:(tm, C_out)     f32 accumulator over the hidden (k) grid axis
    k = pl.program_id(1)

    @pl.when(k == 0)
    def _():
        acc_ref[...] = jnp.zeros_like(acc_ref)

    # fc1 slab on the MXU, f32 accumulation, bias added in f32.
    h = jnp.dot(x_ref[...], w1_ref[...], preferred_element_type=jnp.float32)
    h = h + b1_ref[...]

    if gelu_approx:
        # tanh-approximate GELU: transcendental goes to the (otherwise idle) EUP.
        h = 0.5 * h * (1.0 + jnp.tanh(_SQRT_2_OVER_PI * (h + 0.044715 * h * h * h)))
    else:
        # exact erf GELU (parity with torch.nn.GELU() default).
        h = 0.5 * h * (1.0 + lax.erf(h * _INV_SQRT2))

    # dropout p=0.0 -> identity (no-op).

    # fc2 slab on the MXU; accumulate partial products over hidden slabs in f32.
    acc_ref[...] += jnp.dot(h.astype(w2_ref.dtype), w2_ref[...],
                            preferred_element_type=jnp.float32)

    @pl.when(k == pl.num_programs(1) - 1)
    def _():
        o_ref[...] = (acc_ref[...] + b2_ref[...]).astype(o_ref.dtype)


def mlp_pallas(x, w1, b1, w2, b2, *, tm=256, tk=None, compute_dtype=None,
               out_dtype=None, gelu_approx=False):
    """x: (B, N, C_in) -> (B, N, C_out).  Weights pre-transposed to (in, out)."""
    B, N, C_in = x.shape
    assert w1.shape[0] == C_in
    C_hid = w1.shape[1]
    C_out = w2.shape[1]

    if compute_dtype is None:
        compute_dtype = x.dtype
    if out_dtype is None:
        out_dtype = x.dtype
    compute_dtype = jnp.dtype(compute_dtype)
    out_dtype = jnp.dtype(out_dtype)
    csz = compute_dtype.itemsize
    osz = out_dtype.itemsize

    # ---- hidden (k) tiling: resident weights when they fit, streamed otherwise.
    hid_128 = _round_up(C_hid, 128)
    if tk is None:
        resident_bytes = 2 * (C_in * hid_128 + hid_128 * C_out) * csz
        tk_eff = hid_128 if resident_bytes <= 24 * 1024 * 1024 else 1024
    else:
        tk_eff = min(_round_up(int(tk), 128), hid_128)
    C_hid_pad = _round_up(C_hid, tk_eff)
    grid_k = C_hid_pad // tk_eff

    # ---- row (m) tiling: multiple of the sublane packing for the compute dtype.
    M = B * N
    sub = 8 if csz == 4 else 16
    tm_eff = max(sub, min(int(tm), _round_up(M, sub)))
    tm_eff = _round_up(tm_eff, sub)
    grid_m = pl.cdiv(M, tm_eff)
    M_pad = grid_m * tm_eff

    # ---- host-side reshapes / casts / zero padding (padding is exact: padded
    # hidden columns give GELU(0)=0 and padded w2 rows are zero).
    x2d = x.reshape(M, C_in).astype(compute_dtype)
    if M_pad != M:
        x2d = jnp.pad(x2d, ((0, M_pad - M), (0, 0)))
    w1c = w1.astype(compute_dtype)
    w2c = w2.astype(compute_dtype)
    b1_2d = b1.reshape(1, C_hid).astype(jnp.float32)
    b2_2d = b2.reshape(1, C_out).astype(jnp.float32)
    if C_hid_pad != C_hid:
        dh = C_hid_pad - C_hid
        w1c = jnp.pad(w1c, ((0, 0), (0, dh)))
        b1_2d = jnp.pad(b1_2d, ((0, 0), (0, dh)))
        w2c = jnp.pad(w2c, ((0, dh), (0, 0)))

    # ---- scoped-VMEM budget: double-buffered tiles + f32 scratch/intermediate.
    vmem_needed = (
        2 * tm_eff * C_in * csz            # x tile (constant over k)
        + 2 * C_in * tk_eff * csz          # W1 slab
        + 2 * tk_eff * 4                   # b1 slab (f32)
        + 2 * tk_eff * C_out * csz         # W2 slab
        + 2 * C_out * 4                    # b2 (f32)
        + 2 * tm_eff * C_out * osz         # output tile
        + tm_eff * C_out * 4               # f32 accumulator scratch
        + tm_eff * tk_eff * 4              # f32 GELU intermediate headroom
    )
    vmem_limit = int(min(max(2 * vmem_needed, 32 * 1024 * 1024),
                         64 * 1024 * 1024))

    w_passes = 1 if grid_k == 1 else grid_m   # resident vs streamed per row tile
    cost = pl.CostEstimate(
        flops=2 * M_pad * (C_in * C_hid_pad + C_hid_pad * C_out),
        transcendentals=M_pad * C_hid_pad,
        bytes_accessed=(M_pad * C_in * csz
                        + w_passes * (C_in * C_hid_pad + C_hid_pad * C_out) * csz
                        + (C_hid_pad + C_out) * 4
                        + M_pad * C_out * osz),
    )

    out2d = pl.pallas_call(
        partial(_mlp_kernel, gelu_approx=gelu_approx),
        out_shape=jax.ShapeDtypeStruct((M_pad, C_out), out_dtype),
        grid_spec=pltpu.PrefetchScalarGridSpec(
            num_scalar_prefetch=0,
            grid=(grid_m, grid_k),
            in_specs=[
                pl.BlockSpec((tm_eff, C_in), lambda i, k: (i, 0)),    # x row tile
                pl.BlockSpec((C_in, tk_eff), lambda i, k: (0, k)),    # W1 slab
                pl.BlockSpec((1, tk_eff), lambda i, k: (0, k)),       # b1 slab
                pl.BlockSpec((tk_eff, C_out), lambda i, k: (k, 0)),   # W2 slab
                pl.BlockSpec((1, C_out), lambda i, k: (0, 0)),        # b2
            ],
            out_specs=pl.BlockSpec((tm_eff, C_out), lambda i, k: (i, 0)),
            scratch_shapes=[pltpu.VMEM((tm_eff, C_out), jnp.float32)],
        ),
        compiler_params=pltpu.CompilerParams(
            dimension_semantics=("parallel", "arbitrary"),
            vmem_limit_bytes=vmem_limit,
        ),
        cost_estimate=cost,
    )(x2d, w1c, b1_2d, w2c, b2_2d)

    return out2d[:M].reshape(B, N, C_out)


def _init_linear(key, fan_in, fan_out, dtype=jnp.float32):
    """Deterministic init mimicking nn.Linear (uniform +-1/sqrt(fan_in)).
    Returns weight already transposed to (fan_in, fan_out)."""
    kw, kb = jax.random.split(key)
    bound = 1.0 / math.sqrt(fan_in)
    w = jax.random.uniform(kw, (fan_in, fan_out), dtype, -bound, bound)
    b = jax.random.uniform(kb, (fan_out,), dtype, -bound, bound)
    return w, b


def _reference_mlp(x, w1, b1, w2, b2):
    h = jnp.dot(x, w1) + b1
    h = 0.5 * h * (1.0 + lax.erf(h / math.sqrt(2.0)))
    return jnp.dot(h, w2) + b2


if __name__ == "__main__":
    # Small but lane-dense shapes (feature dims multiples of 128):
    # tokens (B, N, C) = (2, 256, 128), hidden = 4*C = 512, out = C = 128.
    # B*N = 512 rows -> 2 row tiles of tm=256 (both TensorCores busy on v7x).
    B, N = 2, 256
    C_in, C_hid, C_out = 128, 512, 128

    key = jax.random.PRNGKey(0)
    kx, k1, k2 = jax.random.split(key, 3)

    x = jax.random.normal(kx, (B, N, C_in), jnp.float32)
    w1, b1 = _init_linear(k1, C_in, C_hid)
    w2, b2 = _init_linear(k2, C_hid, C_out)

    y_ref = _reference_mlp(x, w1, b1, w2, b2)

    # 1) f32 path: resident weights (grid_k == 1), exact-erf GELU (torch parity).
    mlp_f32 = jax.jit(partial(mlp_pallas, tm=256))
    y32 = jax.block_until_ready(mlp_f32(x, w1, b1, w2, b2))
    assert y32.shape == (B, N, C_out)
    assert jnp.allclose(y32, y_ref, atol=2e-2, rtol=2e-2), "f32 path mismatch"

    # 2) bf16 fast path: bf16 operands on the MXU, f32 accumulation & bias adds.
    mlp_bf16 = jax.jit(partial(mlp_pallas, tm=256,
                               compute_dtype=jnp.bfloat16,
                               out_dtype=jnp.float32))
    y16 = jax.block_until_ready(mlp_bf16(x, w1, b1, w2, b2))
    assert y16.shape == (B, N, C_out)
    assert jnp.allclose(y16, y_ref, atol=6e-2, rtol=6e-2), "bf16 path mismatch"

    # 3) hidden-streamed path (tk=128 -> grid_k=4) + ragged rows (M padding).
    x_odd = x[:, :250]
    y_ref_odd = _reference_mlp(x_odd, w1, b1, w2, b2)
    mlp_stream = jax.jit(partial(mlp_pallas, tm=256, tk=128))
    y_str = jax.block_until_ready(mlp_stream(x_odd, w1, b1, w2, b2))
    assert y_str.shape == (B, 250, C_out)
    assert jnp.allclose(y_str, y_ref_odd, atol=2e-2, rtol=2e-2), "streamed path mismatch"

    print("KERNEL_OK")
</pallas_src>

<mosaic_0001>
module attributes {stable_mosaic.version = 11 : i64} {
  func.func @_mlp_kernel(%arg0: i32, %arg1: i32, %arg2: memref<256x128xf32, #tpu.memory_space<vmem>>, %arg3: memref<128x512xf32, #tpu.memory_space<vmem>>, %arg4: memref<1x512xf32, #tpu.memory_space<vmem>>, %arg5: memref<512x128xf32, #tpu.memory_space<vmem>>, %arg6: memref<1x128xf32, #tpu.memory_space<vmem>>, %arg7: memref<256x128xf32, #tpu.memory_space<vmem>>, %arg8: memref<256x128xf32, #tpu.memory_space<vmem>>) attributes {dimension_semantics = [#tpu.dimension_semantics<parallel>, #tpu.dimension_semantics<arbitrary>], iteration_bounds = array<i64: 2, 1>, scalar_prefetch = 0 : i64, scratch_operands = 1 : i64, tpu.core_type = #tpu.core_type<tc>, window_params = [{transform_indices = @transform_0, window_bounds = array<i64: 256, 128>}, {transform_indices = @transform_1, window_bounds = array<i64: 128, 512>}, {transform_indices = @transform_2, window_bounds = array<i64: 1, 512>}, {transform_indices = @transform_3, window_bounds = array<i64: 512, 128>}, {pipeline_mode = #tpu.pipeline_mode<synchronous>, transform_indices = @transform_4, window_bounds = array<i64: 1, 128>}, {transform_indices = @transform_5, window_bounds = array<i64: 256, 128>}]} {
    %c0_i32 = arith.constant 0 : i32
    %0 = arith.cmpi eq, %arg1, %c0_i32 : i32
    %1 = arith.extui %0 : i1 to i32
    %c0_i32_0 = arith.constant 0 : i32
    %2 = arith.cmpi ne, %1, %c0_i32_0 : i32
    scf.if %2 {
      %cst_18 = arith.constant 0.000000e+00 : f32
      %25 = vector.broadcast %cst_18 : f32 to vector<256x128xf32>
      %c0_19 = arith.constant 0 : index
      %c0_20 = arith.constant 0 : index
      %26 = vector.load %arg8[%c0_19, %c0_20] : memref<256x128xf32, #tpu.memory_space<vmem>>, vector<256x128xf32>
      tpu.vector_store %arg8[%c0_19, %c0_20], %25 {strides = array<i32>} : memref<256x128xf32, #tpu.memory_space<vmem>>, vector<256x128xf32>,
    } else {
    }
    %c0 = arith.constant 0 : index
    %c0_1 = arith.constant 0 : index
    %3 = vector.load %arg2[%c0, %c0_1] : memref<256x128xf32, #tpu.memory_space<vmem>>, vector<256x128xf32>
    %c0_2 = arith.constant 0 : index
    %c0_3 = arith.constant 0 : index
    %4 = vector.load %arg3[%c0_2, %c0_3] : memref<128x512xf32, #tpu.memory_space<vmem>>, vector<128x512xf32>
    %cst = arith.constant dense<0.000000e+00> : vector<256x512xf32>
    %5 = tpu.matmul %3, %4, %cst {dimension_numbers = #tpu.dot_dimension_numbers<[1], [0], [0], [1], [0, 0, 1, 1], [], []>} : vector<256x128xf32>, vector<128x512xf32>, vector<256x512xf32> -> vector<256x512xf32>
    %c0_4 = arith.constant 0 : index
    %c0_5 = arith.constant 0 : index
    %6 = vector.load %arg4[%c0_4, %c0_5] : memref<1x512xf32, #tpu.memory_space<vmem>>, vector<1x512xf32>
    %7 = vector.broadcast %6 : vector<1x512xf32> to vector<256x512xf32>
    %8 = arith.addf %5, %7 : vector<256x512xf32>
    %cst_6 = arith.constant 5.000000e-01 : f32
    %9 = vector.broadcast %cst_6 : f32 to vector<256x512xf32>
    %10 = arith.mulf %9, %8 : vector<256x512xf32>
    %cst_7 = arith.constant 0.707106769 : f32
    %11 = vector.broadcast %cst_7 : f32 to vector<256x512xf32>
    %12 = arith.mulf %8, %11 : vector<256x512xf32>
    %13 = math.erf %12 : vector<256x512xf32>
    %cst_8 = arith.constant 1.000000e+00 : f32
    %14 = vector.broadcast %cst_8 : f32 to vector<256x512xf32>
    %15 = arith.addf %14, %13 : vector<256x512xf32>
    %16 = arith.mulf %10, %15 : vector<256x512xf32>
    %c0_9 = arith.constant 0 : index
    %c0_10 = arith.constant 0 : index
    %17 = vector.load %arg8[%c0_9, %c0_10] : memref<256x128xf32, #tpu.memory_space<vmem>>, vector<256x128xf32>
    %c0_11 = arith.constant 0 : index
    %c0_12 = arith.constant 0 : index
    %18 = vector.load %arg5[%c0_11, %c0_12] : memref<512x128xf32, #tpu.memory_space<vmem>>, vector<512x128xf32>
    %cst_13 = arith.constant dense<0.000000e+00> : vector<256x128xf32>
    %19 = tpu.matmul %16, %18, %cst_13 {dimension_numbers = #tpu.dot_dimension_numbers<[1], [0], [0], [1], [0, 0, 1, 1], [], []>} : vector<256x512xf32>, vector<512x128xf32>, vector<256x128xf32> -> vector<256x128xf32>
    %20 = arith.addf %17, %19 : vector<256x128xf32>
    %c0_14 = arith.constant 0 : index
    %c0_15 = arith.constant 0 : index
    %21 = vector.load %arg8[%c0_14, %c0_15] : memref<256x128xf32, #tpu.memory_space<vmem>>, vector<256x128xf32>
    tpu.vector_store %arg8[%c0_14, %c0_15], %20 {strides = array<i32>} : memref<256x128xf32, #tpu.memory_space<vmem>>, vector<256x128xf32>,
    %c0_i32_16 = arith.constant 0 : i32
    %22 = arith.cmpi eq, %arg1, %c0_i32_16 : i32
    %23 = arith.extui %22 : i1 to i32
    %c0_i32_17 = arith.constant 0 : i32
    %24 = arith.cmpi ne, %23, %c0_i32_17 : i32
    scf.if %24 {
      %c0_18 = arith.constant 0 : index
      %c0_19 = arith.constant 0 : index
      %25 = vector.load %arg8[%c0_18, %c0_19] : memref<256x128xf32, #tpu.memory_space<vmem>>, vector<256x128xf32>
      %c0_20 = arith.constant 0 : index
      %c0_21 = arith.constant 0 : index
      %26 = vector.load %arg6[%c0_20, %c0_21] : memref<1x128xf32, #tpu.memory_space<vmem>>, vector<1x128xf32>
      %27 = vector.broadcast %26 : vector<1x128xf32> to vector<256x128xf32>
      %28 = arith.addf %25, %27 : vector<256x128xf32>
      %c0_22 = arith.constant 0 : index
      %c0_23 = arith.constant 0 : index
      %29 = vector.load %arg7[%c0_22, %c0_23] : memref<256x128xf32, #tpu.memory_space<vmem>>, vector<256x128xf32>
      tpu.vector_store %arg7[%c0_22, %c0_23], %28 {strides = array<i32>} : memref<256x128xf32, #tpu.memory_space<vmem>>, vector<256x128xf32>,
    } else {
    }
    return
  }
  func.func @transform_0(%arg0: i32, %arg1: i32) -> (i32, i32) {
    %c0_i32 = arith.constant 0 : i32
    %c0_i32_0 = arith.constant 0 : i32
    return %arg0, %c0_i32 : i32, i32
  }
  func.func @transform_1(%arg0: i32, %arg1: i32) -> (i32, i32) {
    %c0_i32 = arith.constant 0 : i32
    %c0_i32_0 = arith.constant 0 : i32
    return %c0_i32, %arg1 : i32, i32
  }
  func.func @transform_2(%arg0: i32, %arg1: i32) -> (i32, i32) {
    %c0_i32 = arith.constant 0 : i32
    %c0_i32_0 = arith.constant 0 : i32
    return %c0_i32, %arg1 : i32, i32
  }
  func.func @transform_3(%arg0: i32, %arg1: i32) -> (i32, i32) {
    %c0_i32 = arith.constant 0 : i32
    %c0_i32_0 = arith.constant 0 : i32
    return %arg1, %c0_i32 : i32, i32
  }
  func.func @transform_4(%arg0: i32, %arg1: i32) -> (i32, i32) {
    %c0_i32 = arith.constant 0 : i32
    %c0_i32_0 = arith.constant 0 : i32
    %c0_i32_1 = arith.constant 0 : i32
    return %c0_i32, %c0_i32_0 : i32, i32
  }
  func.func @transform_5(%arg0: i32, %arg1: i32) -> (i32, i32) {
    %c0_i32 = arith.constant 0 : i32
    %c0_i32_0 = arith.constant 0 : i32
    return %arg0, %c0_i32 : i32, i32
  }
}

</mosaic_0001>

<llo_original>
// kernel: mlp_pallas.1
$region0: #{mlp_pallas.1}
  #allocation0 [shape = 'u32[]', space=smem, size = 0x4, offset = 0x4, fixed_abs, tag = 'smem constant byte address 0x4 - core index']
  #allocation1 [shape = 'u32[144,128]{1,0:T(1,128)}', space=vmem, size = 0x12000, scoped, tag = 'internal scratch']
  #allocation2 [shape = 'f32[256,128]{1,0:T(8,128)}', space=vmem, size = 0x20000, scoped, tag = 'scratch operand']
  %s0 = inlined_call_operand.hbm [shape: f32[512,128], index: 0, kind: input, shape index: {}]
  %s1 = inlined_call_operand.hbm [shape: f32[128,512], index: 1, kind: input, shape index: {}]
  %s2 = inlined_call_operand.vmem [shape: f32[1,512], index: 2, kind: input, shape index: {}]
  %s3 = inlined_call_operand.hbm [shape: f32[512,128], index: 3, kind: input, shape index: {}]
  %s4 = inlined_call_operand.vmem [shape: f32[1,128], index: 4, kind: input, shape index: {}]
  %s5 = inlined_call_operand.hbm [shape: f32[512,128], index: 5, kind: output, shape index: {}]
  %s6 = sld [smem:[#allocation0]]
  $region73: #{mlp_pallas.1} parent=0
    _
  %s8 = ssub.s32 1, %s6
  %s9 = scalar_select 0, %s8, %s6
  $region1: #{mlp_pallas.1} parent=0
    #allocation3 [shape = 'u8[262144]{0}', space=vmem, size = 0x40000, scoped, tag = 'input window, operand 0']
    #allocation4 [shape = 's32[2]{0}', space=sflag, size = 0x8, scoped, tag = 'scoped memory for mlp_pallas.1']
    #allocation5 [shape = 's32[2]{0}', space=sflag, size = 0x8, scoped, tag = 'scoped memory for mlp_pallas.1']
    #allocation6 [shape = 'u8[262144]{0}', space=vmem, size = 0x40000, scoped, tag = 'input window, operand 1, single buffered']
    #allocation7 [shape = 's32[1]{0}', space=sflag, size = 0x4, scoped, tag = 'scoped memory for mlp_pallas.1']
    #allocation8 [shape = 'u8[262144]{0}', space=vmem, size = 0x40000, scoped, tag = 'input window, operand 3, single buffered']
    #allocation9 [shape = 'u8[262144]{0}', space=vmem, size = 0x40000, scoped, tag = 'output window, operand 0']
    %10 = vsyncpa [#allocation4], 0
    %s11 = scalar_lea.sflag [#allocation4], 1
    %12 = vsyncpa %s11, 0
    %13 = vsyncpa [#allocation7], 0
    %14 = vsyncpa [#allocation5], 0
    %s15 = scalar_lea.sflag [#allocation5], 1
    %16 = vsyncpa %s15, 0
    loop: start=0, step=1, limit=4
    $region2: #{mlp_pallas.1} parent=1 // loop_pre_header
      _
    $region3: #{mlp_pallas.1} parent=1 // loop_header
      %s18 = sphi 0, %s22
      %p19 = scmp.ge.s32.totalorder %s18, 4
      %s25 = sphi 0, %s37
      %s26 = sphi 0, %s33
      %s27 = sphi 0, %s25
      %s28 = sphi 0, %s26
      %s29 = sphi 0, %s27
      %s30 = sphi 0, %s28
      %s40 = sphi 0, %s42
      %s43 = sphi 0, %s40
      %s44 = sphi 0, %s43
      %s60 = sphi 0, %s44
      %s66 = sphi 0, %s68
      %s69 = sphi 0, %s66
      %s70 = sphi 0, %s69
      %s86 = sphi 0, %s70
      %s92 = sphi 0, %s94
      %s95 = sphi 0, %s92
      %s96 = sphi 0, %s95
      %s112 = sphi 0, %s96
      %s118 = sphi 0, %s120
      %s121 = sphi 0, %s118
      %s122 = sphi 0, %s121
      %s138 = sphi 0, %s122
      %s142 = sphi 0, %s142
      %s144 = sphi 0, %s142
      %s145 = sphi 0, %s144
      %s159 = sphi 0, %s145
      %s165 = sphi 0, %s167
      %s168 = sphi 0, %s165
      %s169 = sphi 0, %s168
      %s185 = sphi 0, %s169
    $region4: #{mlp_pallas.1} parent=1 // loop_header_branch
      %21 = sbr.rel (%p19) target = $region8
    $region5: #{mlp_pallas.1} parent=1 // loop_body
      %s23 = ssub.s32 %s18, 1
      %s24 = ssub.s32 %s18, 2
      %s31 = sadd.s32 1, %s26
      %p32 = scmp.ge.s32.totalorder %s31, 1
      %s33 = scalar_select %p32, 0, %s31
      %s34 = sadd.s32 1, %s25
      %s35 = scalar_select %p32, %s34, %s25
      %p36 = scmp.ge.s32.totalorder %s35, 2
      %s37 = scalar_select %p36, 0, %s35
      %s38 = ssub.s32 %s25, %s37
      %p39 = scmp.eq.s32.totalorder %s38, 0
      %s41 = sadd.s32 %s40, 1
      %s42 = scalar_select %p39, %s40, %s41
      %p45 = pneg %p39
      %p46 = scmp.eq.s32.totalorder %s18, 1
      %p47 = por %p45, %p46
      %p48 = scmp.ne.s32.totalorder %s40, %s43
      %p49 = scmp.eq.s32.totalorder %s18, 0
      %p50 = por %p48, %p49
      %p51 = scmp.ne.s32.totalorder %s40, %s43
      %p52 = scmp.eq.s32.totalorder %s23, 1
      %p53 = por %p51, %p52
      %p54 = scmp.ne.s32.totalorder %s43, %s44
      %p55 = scmp.eq.s32.totalorder %s23, 0
      %p56 = por %p54, %p55
      %p57 = scmp.ne.s32.totalorder %s43, %s44
      %p58 = scmp.eq.s32.totalorder %s24, 1
      %p59 = por %p57, %p58
      %p61 = scmp.ne.s32.totalorder %s44, %s60
      %p62 = scmp.eq.s32.totalorder %s24, 0
      %p63 = por %p61, %p62
      %s64 = ssub.s32 %s26, %s33
      %p65 = scmp.eq.s32.totalorder %s64, 0
      %s67 = sadd.s32 %s66, 1
      %s68 = scalar_select %p65, %s66, %s67
      %p71 = pneg %p65
      %p72 = scmp.eq.s32.totalorder %s18, 1
      %p73 = por %p71, %p72
      %p74 = scmp.ne.s32.totalorder %s66, %s69
      %p75 = scmp.eq.s32.totalorder %s18, 0
      %p76 = por %p74, %p75
      %p77 = scmp.ne.s32.totalorder %s66, %s69
      %p78 = scmp.eq.s32.totalorder %s23, 1
      %p79 = por %p77, %p78
      %p80 = scmp.ne.s32.totalorder %s69, %s70
      %p81 = scmp.eq.s32.totalorder %s23, 0
      %p82 = por %p80, %p81
      %p83 = scmp.ne.s32.totalorder %s69, %s70
      %p84 = scmp.eq.s32.totalorder %s24, 1
      %p85 = por %p83, %p84
      %p87 = scmp.ne.s32.totalorder %s70, %s86
      %p88 = scmp.eq.s32.totalorder %s24, 0
      %p89 = por %p87, %p88
      %s90 = ssub.s32 %s26, %s33
      %p91 = scmp.eq.s32.totalorder %s90, 0
      %s93 = sadd.s32 %s92, 1
      %s94 = scalar_select %p91, %s92, %s93
      %p97 = pneg %p91
      %p98 = scmp.eq.s32.totalorder %s18, 1
      %p99 = por %p97, %p98
      %p100 = scmp.ne.s32.totalorder %s92, %s95
      %p101 = scmp.eq.s32.totalorder %s18, 0
      %p102 = por %p100, %p101
      %p103 = scmp.ne.s32.totalorder %s92, %s95
      %p104 = scmp.eq.s32.totalorder %s23, 1
      %p105 = por %p103, %p104
      %p106 = scmp.ne.s32.totalorder %s95, %s96
      %p107 = scmp.eq.s32.totalorder %s23, 0
      %p108 = por %p106, %p107
      %p109 = scmp.ne.s32.totalorder %s95, %s96
      %p110 = scmp.eq.s32.totalorder %s24, 1
      %p111 = por %p109, %p110
      %p113 = scmp.ne.s32.totalorder %s96, %s112
      %p114 = scmp.eq.s32.totalorder %s24, 0
      %p115 = por %p113, %p114
      %s116 = ssub.s32 %s26, %s33
      %p117 = scmp.eq.s32.totalorder %s116, 0
      %s119 = sadd.s32 %s118, 1
      %s120 = scalar_select %p117, %s118, %s119
      %p123 = pneg %p117
      %p124 = scmp.eq.s32.totalorder %s18, 1
      %p125 = por %p123, %p124
      %p126 = scmp.ne.s32.totalorder %s118, %s121
      %p127 = scmp.eq.s32.totalorder %s18, 0
      %p128 = por %p126, %p127
      %p129 = scmp.ne.s32.totalorder %s118, %s121
      %p130 = scmp.eq.s32.totalorder %s23, 1
      %p131 = por %p129, %p130
      %p132 = scmp.ne.s32.totalorder %s121, %s122
      %p133 = scmp.eq.s32.totalorder %s23, 0
      %p134 = por %p132, %p133
      %p135 = scmp.ne.s32.totalorder %s121, %s122
      %p136 = scmp.eq.s32.totalorder %s24, 1
      %p137 = por %p135, %p136
      %p139 = scmp.ne.s32.totalorder %s122, %s138
      %p140 = scmp.eq.s32.totalorder %s24, 0
      %p141 = por %p139, %p140
      %s143 = sadd.s32 %s142, 1
      %p146 = scmp.eq.s32.totalorder %s18, 1
      %p147 = scmp.ne.s32.totalorder %s142, %s144
      %p148 = scmp.eq.s32.totalorder %s18, 0
      %p149 = por %p147, %p148
      %p150 = scmp.ne.s32.totalorder %s142, %s144
      %p151 = scmp.eq.s32.totalorder %s23, 1
      %p152 = por %p150, %p151
      %p153 = scmp.ne.s32.totalorder %s144, %s145
      %p154 = scmp.eq.s32.totalorder %s23, 0
      %p155 = por %p153, %p154
      %p156 = scmp.ne.s32.totalorder %s144, %s145
      %p157 = scmp.eq.s32.totalorder %s24, 1
      %p158 = por %p156, %p157
      %p160 = scmp.ne.s32.totalorder %s145, %s159
      %p161 = scmp.eq.s32.totalorder %s24, 0
      %p162 = por %p160, %p161
      %s163 = ssub.s32 %s25, %s37
      %p164 = scmp.eq.s32.totalorder %s163, 0
      %s166 = sadd.s32 %s165, 1
      %s167 = scalar_select %p164, %s165, %s166
      %p170 = pneg %p164
      %p171 = scmp.eq.s32.totalorder %s18, 1
      %p172 = por %p170, %p171
      %p173 = scmp.ne.s32.totalorder %s165, %s168
      %p174 = scmp.eq.s32.totalorder %s18, 0
      %p175 = por %p173, %p174
      %p176 = scmp.ne.s32.totalorder %s165, %s168
      %p177 = scmp.eq.s32.totalorder %s23, 1
      %p178 = por %p176, %p177
      %p179 = scmp.ne.s32.totalorder %s168, %s169
      %p180 = scmp.eq.s32.totalorder %s23, 0
      %p181 = por %p179, %p180
      %p182 = scmp.ne.s32.totalorder %s168, %s169
      %p183 = scmp.eq.s32.totalorder %s24, 1
      %p184 = por %p182, %p183
      %p186 = scmp.ne.s32.totalorder %s169, %s185
      %p187 = scmp.eq.s32.totalorder %s24, 0
      %p188 = por %p186, %p187
      %p189 = scmp.le.s32.totalorder 1, %s18
      %p190 = scmp.lt.s32.totalorder %s18, 3
      %p191 = pnand %p189, %p190
      %p192 = pneg %p191
      // Predicated region
      $region9: #{mlp_pallas.1} parent=5 // pred_check
        _
      $region10: #{mlp_pallas.1} parent=5 // pred_check_branch
        %194 = sbr.rel (%p191) target = $region12
      $region11: #{mlp_pallas.1} parent=5 // pred_region
        %s195 = ssub.s32 %s18, 1
        // Predicated region
        $region13: #{mlp_pallas.1} parent=11 // pred_check
          %p196 = pneg %p82
        $region14: #{mlp_pallas.1} parent=11 // pred_check_branch
          %198 = sbr.rel (%p196) target = $region16
        $region15: #{mlp_pallas.1} parent=11 // pred_region
          %s199 = smul.u32 4, %s28
          %s201 = ssub.s32 8192, 8192
          %202 = vsyncadd [#allocation7], %s201
          %s203 = smul.addr %s199, 128
          %s204 = scalar_lea.hbm %s1, %s203
          %s205 = sshll.u32 [#allocation6], 4
          %s206 = int_to_ptr.vmem [resolvable:$true] %s205
          %211 = dma.hbm_to_vmem [thread:$0]  %s204, 8192, %s206, [#allocation7], 512, 512, 32
        $region16: #{mlp_pallas.1} parent=11 // pred_fallthru
          _
        // Predicated region
        $region17: #{mlp_pallas.1} parent=11 // pred_check
          %p212 = pneg %p108
        $region18: #{mlp_pallas.1} parent=11 // pred_check_branch
          %214 = sbr.rel (%p212) target = $region20
        $region19: #{mlp_pallas.1} parent=11 // pred_region
          %s215 = smul.u32 4, %s28
          %p216 = scmp.lt.s32.totalorder %s215, 3
          %s217 = scalar_select %p216, %s215, 3
          %s218 = scalar_lea.vmem %s2, %s217
          %s219 = smul.u32 4, %s28
        $region20: #{mlp_pallas.1} parent=11 // pred_fallthru
          _
        // Predicated region
        $region21: #{mlp_pallas.1} parent=11 // pred_check
          %p220 = pneg %p134
        $region22: #{mlp_pallas.1} parent=11 // pred_check_branch
          %222 = sbr.rel (%p220) target = $region24
        $region23: #{mlp_pallas.1} parent=11 // pred_region
          %s223 = smul.u32 64, %s28
          %s225 = ssub.s32 8192, 8192
          %226 = vsyncadd [#allocation7], %s225
          %s227 = smul.addr %s223, 128
          %s228 = scalar_lea.hbm %s3, %s227
          %s229 = sshll.u32 [#allocation8], 4
          %s230 = int_to_ptr.vmem [resolvable:$true] %s229
          %235 = dma.hbm_to_vmem [thread:$0]  %s228, 8192, %s230, [#allocation7], 128, 128, 8
        $region24: #{mlp_pallas.1} parent=11 // pred_fallthru
          _
        // Predicated region
        $region25: #{mlp_pallas.1} parent=11 // pred_check
          %p236 = pneg %p155
        $region26: #{mlp_pallas.1} parent=11 // pred_check_branch
          %238 = sbr.rel (%p236) target = $region28
        $region27: #{mlp_pallas.1} parent=11 // pred_region
          _
        $region28: #{mlp_pallas.1} parent=11 // pred_fallthru
          _
      $region12: #{mlp_pallas.1} parent=5 // pred_fallthru
        _
      %p239 = scmp.lt.s32.totalorder %s18, 2
      // Predicated region
      $region29: #{mlp_pallas.1} parent=5 // pred_check
        %p240 = pneg %p239
      $region30: #{mlp_pallas.1} parent=5 // pred_check_branch
        %242 = sbr.rel (%p240) target = $region32
      $region31: #{mlp_pallas.1} parent=5 // pred_region
        // Predicated region
        $region33: #{mlp_pallas.1} parent=31 // pred_check
          %p243 = pneg %p50
        $region34: #{mlp_pallas.1} parent=31 // pred_check_branch
          %245 = sbr.rel (%p243) target = $region36
        $region35: #{mlp_pallas.1} parent=31 // pred_region
          %s246 = sand.u32 %s40, 1
          %s247 = scalar_lea.sflag [#allocation4], %s246
          %s248 = sand.u32 %s40, 1
          %s249 = smul.addr %s248, 256
          %s250 = scalar_lea.vmem [#allocation3], %s249
          %s251 = smul.u32 32, %s25
          %s253 = ssub.s32 4096, 4096
          %254 = vsyncadd %s247, %s253
          %s255 = smul.addr %s251, 128
          %s256 = scalar_lea.hbm %s0, %s255
          %s257 = sshll.u32 %s250, 4
          %s258 = int_to_ptr.vmem [resolvable:$true] %s257
          %263 = dma.hbm_to_vmem [thread:$0]  %s256, 4096, %s258, %s247, 128, 128, 8
        $region36: #{mlp_pallas.1} parent=31 // pred_fallthru
          _
      $region32: #{mlp_pallas.1} parent=5 // pred_fallthru
        _
      %p264 = scmp.le.s32.totalorder 1, %s18
      %p265 = scmp.lt.s32.totalorder %s18, 3
      %p266 = pnand %p264, %p265
      %p267 = pneg %p266
      // Predicated region
      $region37: #{mlp_pallas.1} parent=5 // pred_check
        _
      $region38: #{mlp_pallas.1} parent=5 // pred_check_branch
        %269 = sbr.rel (%p266) target = $region40
      $region39: #{mlp_pallas.1} parent=5 // pred_region
        %s270 = ssub.s32 %s18, 1
        %s271 = sand.u32 %s43, 1
        %s272 = scalar_lea.sflag [#allocation4], %s271
        %s273 = sand.u32 %s43, 1
        %s274 = smul.addr %s273, 256
        %s275 = scalar_lea.vmem [#allocation3], %s274
        // Predicated region
        $region41: #{mlp_pallas.1} parent=39 // pred_check
          %p276 = pneg %p56
        $region42: #{mlp_pallas.1} parent=39 // pred_check_branch
          %278 = sbr.rel (%p276) target = $region44
        $region43: #{mlp_pallas.1} parent=39 // pred_region
          %279 = dma.done %s272, 4096
        $region44: #{mlp_pallas.1} parent=39 // pred_fallthru
          _
        // Predicated region
        $region45: #{mlp_pallas.1} parent=39 // pred_check
          %p280 = pneg %p82
        $region46: #{mlp_pallas.1} parent=39 // pred_check_branch
          %282 = sbr.rel (%p280) target = $region48
        $region47: #{mlp_pallas.1} parent=39 // pred_region
          %283 = dma.done [#allocation7], 8192
        $region48: #{mlp_pallas.1} parent=39 // pred_fallthru
          _
        // Predicated region
        $region49: #{mlp_pallas.1} parent=39 // pred_check
          %p284 = pneg %p134
        $region50: #{mlp_pallas.1} parent=39 // pred_check_branch
          %286 = sbr.rel (%p284) target = $region52
        $region51: #{mlp_pallas.1} parent=39 // pred_region
          %287 = dma.done [#allocation7], 8192
        $region52: #{mlp_pallas.1} parent=39 // pred_fallthru
          _
        %s288 = sand.u32 %s43, 1
        %s289 = scalar_lea.sflag [#allocation4], %s288
        %s290 = sand.u32 %s43, 1
        %s291 = smul.addr %s290, 256
        %s292 = scalar_lea.vmem [#allocation3], %s291
        %p293 = pneg %p56
        %p294 = pneg %p53
        %p295 = pneg %p82
        %p296 = pneg %p79
        %s297 = smul.u32 4, %s28
        %p298 = scmp.lt.s32.totalorder %s297, 3
        %s299 = scalar_select %p298, %s297, 3
        %s300 = scalar_lea.vmem %s2, %s299
        %p301 = pneg %p108
        %p302 = pneg %p105
        %p303 = pneg %p134
        %p304 = pneg %p131
        %p305 = pneg %p155
        %p306 = pneg %p152
        %p307 = pneg %p181
        %p308 = pneg %p178
        %s309 = sand.u32 %s168, 1
        %s310 = scalar_lea.sflag [#allocation5], %s309
        %s311 = sand.u32 %s168, 1
        %s312 = smul.addr %s311, 256
        %s313 = scalar_lea.vmem [#allocation9], %s312
        %s314 = smul.u32 32, %s27
        %s315 = smul.u32 4, %s28
        %s316 = smul.u32 4, %s28
        %p317 = scmp.lt.s32.totalorder %s316, 3
        %s318 = scalar_select %p317, %s316, 3
        %s319 = scalar_lea.vmem %s2, %s318
        %s320 = smul.u32 4, %s28
        %s321 = smul.u32 64, %s28
        %s322 = smul.u32 32, %s27
        %p323 = scmp.eq.s32.totalorder %s28, 0
        // Predicated region
        $region53: #{mlp_pallas.1} parent=39 // pred_check
          %p324 = pneg %p323
        $region54: #{mlp_pallas.1} parent=39 // pred_check_branch
          %326 = sbr.rel (%p324) target = $region56
        $region55: #{mlp_pallas.1} parent=39 // pred_region
          %327 = vst [vmem:[#allocation2] sm:$0xff] 0.0
          %328 = vst [vmem:[#allocation2 + $0x8] sm:$0xff] 0.0
          %329 = vst [vmem:[#allocation2 + $0x10] sm:$0xff] 0.0
          %330 = vst [vmem:[#allocation2 + $0x18] sm:$0xff] 0.0
          %331 = vst [vmem:[#allocation2 + $0x20] sm:$0xff] 0.0
          %332 = vst [vmem:[#allocation2 + $0x28] sm:$0xff] 0.0
          %333 = vst [vmem:[#allocation2 + $0x30] sm:$0xff] 0.0
          %334 = vst [vmem:[#allocation2 + $0x38] sm:$0xff] 0.0
          %335 = vst [vmem:[#allocation2 + $0x40] sm:$0xff] 0.0
          %336 = vst [vmem:[#allocation2 + $0x48] sm:$0xff] 0.0
          %337 = vst [vmem:[#allocation2 + $0x50] sm:$0xff] 0.0
          %338 = vst [vmem:[#allocation2 + $0x58] sm:$0xff] 0.0
          %339 = vst [vmem:[#allocation2 + $0x60] sm:$0xff] 0.0
          %340 = vst [vmem:[#allocation2 + $0x68] sm:$0xff] 0.0
          %341 = vst [vmem:[#allocation2 + $0x70] sm:$0xff] 0.0
          %342 = vst [vmem:[#allocation2 + $0x78] sm:$0xff] 0.0
          %343 = vst [vmem:[#allocation2 + $0x80] sm:$0xff] 0.0
          %344 = vst [vmem:[#allocation2 + $0x88] sm:$0xff] 0.0
          %345 = vst [vmem:[#allocation2 + $0x90] sm:$0xff] 0.0
          %346 = vst [vmem:[#allocation2 + $0x98] sm:$0xff] 0.0
          %347 = vst [vmem:[#allocation2 + $0xa0] sm:$0xff] 0.0
          %348 = vst [vmem:[#allocation2 + $0xa8] sm:$0xff] 0.0
          %349 = vst [vmem:[#allocation2 + $0xb0] sm:$0xff] 0.0
          %350 = vst [vmem:[#allocation2 + $0xb8] sm:$0xff] 0.0
          %351 = vst [vmem:[#allocation2 + $0xc0] sm:$0xff] 0.0
          %352 = vst [vmem:[#allocation2 + $0xc8] sm:$0xff] 0.0
          %353 = vst [vmem:[#allocation2 + $0xd0] sm:$0xff] 0.0
          %354 = vst [vmem:[#allocation2 + $0xd8] sm:$0xff] 0.0
          %355 = vst [vmem:[#allocation2 + $0xe0] sm:$0xff] 0.0
          %356 = vst [vmem:[#allocation2 + $0xe8] sm:$0xff] 0.0
          %357 = vst [vmem:[#allocation2 + $0xf0] sm:$0xff] 0.0
          %358 = vst [vmem:[#allocation2 + $0xf8] sm:$0xff] 0.0
        $region56: #{mlp_pallas.1} parent=39 // pred_fallthru
          _
        %v359 = vld [vmem:[%s275] sm:$0xff]
        %v360 = vld [vmem:[%s275 + $0x8] sm:$0xff]
        %v361 = vld [vmem:[%s275 + $0x10] sm:$0xff]
        %v362 = vld [vmem:[%s275 + $0x18] sm:$0xff]
        %v363 = vld [vmem:[%s275 + $0x20] sm:$0xff]
        %v364 = vld [vmem:[%s275 + $0x28] sm:$0xff]
        %v365 = vld [vmem:[%s275 + $0x30] sm:$0xff]
        %v366 = vld [vmem:[%s275 + $0x38] sm:$0xff]
        %v367 = vld [vmem:[%s275 + $0x40] sm:$0xff]
        %v368 = vld [vmem:[%s275 + $0x48] sm:$0xff]
        %v369 = vld [vmem:[%s275 + $0x50] sm:$0xff]
        %v370 = vld [vmem:[%s275 + $0x58] sm:$0xff]
        %v371 = vld [vmem:[%s275 + $0x60] sm:$0xff]
        %v372 = vld [vmem:[%s275 + $0x68] sm:$0xff]
        %v373 = vld [vmem:[%s275 + $0x70] sm:$0xff]
        %v374 = vld [vmem:[%s275 + $0x78] sm:$0xff]
        %v375 = vld [vmem:[%s275 + $0x80] sm:$0xff]
        %v376 = vld [vmem:[%s275 + $0x88] sm:$0xff]
        %v377 = vld [vmem:[%s275 + $0x90] sm:$0xff]
        %v378 = vld [vmem:[%s275 + $0x98] sm:$0xff]
        %v379 = vld [vmem:[%s275 + $0xa0] sm:$0xff]
        %v380 = vld [vmem:[%s275 + $0xa8] sm:$0xff]
        %v381 = vld [vmem:[%s275 + $0xb0] sm:$0xff]
        %v382 = vld [vmem:[%s275 + $0xb8] sm:$0xff]
        %v383 = vld [vmem:[%s275 + $0xc0] sm:$0xff]
        %v384 = vld [vmem:[%s275 + $0xc8] sm:$0xff]
        %v385 = vld [vmem:[%s275 + $0xd0] sm:$0xff]
        %v386 = vld [vmem:[%s275 + $0xd8] sm:$0xff]
        %v387 = vld [vmem:[%s275 + $0xe0] sm:$0xff]
        %v388 = vld [vmem:[%s275 + $0xe8] sm:$0xff]
        %v389 = vld [vmem:[%s275 + $0xf0] sm:$0xff]
        %v390 = vld [vmem:[%s275 + $0xf8] sm:$0xff]
        %v391 = vld [vmem:[#allocation6] sm:$0xff]
        %v392 = vld [vmem:[#allocation6 + $0x8] sm:$0xff]
        %v393 = vld [vmem:[#allocation6 + $0x10] sm:$0xff]
        %v394 = vld [vmem:[#allocation6 + $0x18] sm:$0xff]
        %v395 = vld [vmem:[#allocation6 + $0x20] sm:$0xff]
        %v396 = vld [vmem:[#allocation6 + $0x28] sm:$0xff]
        %v397 = vld [vmem:[#allocation6 + $0x30] sm:$0xff]
        %v398 = vld [vmem:[#allocation6 + $0x38] sm:$0xff]
        %v399 = vld [vmem:[#allocation6 + $0x40] sm:$0xff]
        %v400 = vld [vmem:[#allocation6 + $0x48] sm:$0xff]
        %v401 = vld [vmem:[#allocation6 + $0x50] sm:$0xff]
        %v402 = vld [vmem:[#allocation6 + $0x58] sm:$0xff]
        %v403 = vld [vmem:[#allocation6 + $0x60] sm:$0xff]
        %v404 = vld [vmem:[#allocation6 + $0x68] sm:$0xff]
        %v405 = vld [vmem:[#allocation6 + $0x70] sm:$0xff]
        %v406 = vld [vmem:[#allocation6 + $0x78] sm:$0xff]
        %v407 = vld [vmem:[#allocation6 + $0x80] sm:$0xff]
        %v408 = vld [vmem:[#allocation6 + $0x88] sm:$0xff]
        %v409 = vld [vmem:[#allocation6 + $0x90] sm:$0xff]
        %v410 = vld [vmem:[#allocation6 + $0x98] sm:$0xff]
        %v411 = vld [vmem:[#allocation6 + $0xa0] sm:$0xff]
        %v412 = vld [vmem:[#allocation6 + $0xa8] sm:$0xff]
        %v413 = vld [vmem:[#allocation6 + $0xb0] sm:$0xff]
        %v414 = vld [vmem:[#allocation6 + $0xb8] sm:$0xff]
        %v415 = vld [vmem:[#allocation6 + $0xc0] sm:$0xff]
        %v416 = vld [vmem:[#allocation6 + $0xc8] sm:$0xff]
        %v417 = vld [vmem:[#allocation6 + $0xd0] sm:$0xff]
        %v418 = vld [vmem:[#allocation6 + $0xd8] sm:$0xff]
        %v419 = vld [vmem:[#allocation6 + $0xe0] sm:$0xff]
        %v420 = vld [vmem:[#allocation6 + $0xe8] sm:$0xff]
        %v421 = vld [vmem:[#allocation6 + $0xf0] sm:$0xff]
        %v422 = vld [vmem:[#allocation6 + $0xf8] sm:$0xff]
        %v423 = vld [vmem:[#allocation6 + $0x100] sm:$0xff]
        %v424 = vld [vmem:[#allocation6 + $0x108] sm:$0xff]
        %v425 = vld [vmem:[#allocation6 + $0x110] sm:$0xff]
        %v426 = vld [vmem:[#allocation6 + $0x118] sm:$0xff]
        %v427 = vld [vmem:[#allocation6 + $0x120] sm:$0xff]
        %v428 = vld [vmem:[#allocation6 + $0x128] sm:$0xff]
        %v429 = vld [vmem:[#allocation6 + $0x130] sm:$0xff]
        %v430 = vld [vmem:[#allocation6 + $0x138] sm:$0xff]
        %v431 = vld [vmem:[#allocation6 + $0x140] sm:$0xff]
        %v432 = vld [vmem:[#allocation6 + $0x148] sm:$0xff]
        %v433 = vld [vmem:[#allocation6 + $0x150] sm:$0xff]
        %v434 = vld [vmem:[#allocation6 + $0x158] sm:$0xff]
        %v435 = vld [vmem:[#allocation6 + $0x160] sm:$0xff]
        %v436 = vld [vmem:[#allocation6 + $0x168] sm:$0xff]
        %v437 = vld [vmem:[#allocation6 + $0x170] sm:$0xff]
        %v438 = vld [vmem:[#allocation6 + $0x178] sm:$0xff]
        %v439 = vld [vmem:[#allocation6 + $0x180] sm:$0xff]
        %v440 = vld [vmem:[#allocation6 + $0x188] sm:$0xff]
        %v441 = vld [vmem:[#allocation6 + $0x190] sm:$0xff]
        %v442 = vld [vmem:[#allocation6 + $0x198] sm:$0xff]
        %v443 = vld [vmem:[#allocation6 + $0x1a0] sm:$0xff]
        %v444 = vld [vmem:[#allocation6 + $0x1a8] sm:$0xff]
        %v445 = vld [vmem:[#allocation6 + $0x1b0] sm:$0xff]
        %v446 = vld [vmem:[#allocation6 + $0x1b8] sm:$0xff]
        %v447 = vld [vmem:[#allocation6 + $0x1c0] sm:$0xff]
        %v448 = vld [vmem:[#allocation6 + $0x1c8] sm:$0xff]
        %v449 = vld [vmem:[#allocation6 + $0x1d0] sm:$0xff]
        %v450 = vld [vmem:[#allocation6 + $0x1d8] sm:$0xff]
        %v451 = vld [vmem:[#allocation6 + $0x1e0] sm:$0xff]
        %v452 = vld [vmem:[#allocation6 + $0x1e8] sm:$0xff]
        %v453 = vld [vmem:[#allocation6 + $0x1f0] sm:$0xff]
        %v454 = vld [vmem:[#allocation6 + $0x1f8] sm:$0xff]
        %v455 = vld [vmem:[%s319] sm:$0xf]
        %v457 = vlaneseq
        %v458 = vshrl.u32 %v457, 7
        %v459 = vsub.s32 0, %v458
        %v460 = vrot.slane %v455, %v459
        %v461 = vlaneseq
        %v462 = vshrl.u32 %v461, 7
        %v463 = vsub.s32 1, %v462
        %v464 = vrot.slane %v455, %v463
        %v465 = vlaneseq
        %v466 = vshrl.u32 %v465, 7
        %v467 = vsub.s32 2, %v466
        %v468 = vrot.slane %v455, %v467
        %v469 = vlaneseq
        %v470 = vshrl.u32 %v469, 7
        %v471 = vsub.s32 3, %v470
        %v472 = vrot.slane %v455, %v471
        %477 = vmatprep.subr.mxu0 %v452
        %478 = vmatpush1.msra.mxu0 %v451
        %479 = vmatprep.subr.mxu0 %v448
        %480 = vmatpush1.msra.mxu0 %v447
        %481 = vmatprep.subr.mxu0 %v444
        %482 = vmatpush1.msra.mxu0 %v443
        %483 = vmatprep.subr.mxu0 %v440
        %484 = vmatpush1.msra.mxu0 %v439
        %485 = vmatprep.subr.mxu0 %v436
        %486 = vmatpush1.msra.mxu0 %v435
        %487 = vmatprep.subr.mxu0 %v432
        %488 = vmatpush1.msra.mxu0 %v431
        %489 = vmatprep.subr.mxu0 %v428
        %490 = vmatpush1.msra.mxu0 %v427
        %491 = vmatprep.subr.mxu0 %v424
        %492 = vmatpush1.msra.mxu0 %v423
        %493 = vmatprep.subr.mxu0 %v420
        %494 = vmatpush1.msra.mxu0 %v419
        %495 = vmatprep.subr.mxu0 %v416
        %496 = vmatpush1.msra.mxu0 %v415
        %497 = vmatprep.subr.mxu0 %v412
        %498 = vmatpush1.msra.mxu0 %v411
        %499 = vmatprep.subr.mxu0 %v408
        %500 = vmatpush1.msra.mxu0 %v407
        %501 = vmatprep.subr.mxu0 %v404
        %502 = vmatpush1.msra.mxu0 %v403
        %503 = vmatprep.subr.mxu0 %v400
        %504 = vmatpush1.msra.mxu0 %v399
        %505 = vmatprep.subr.mxu0 %v396
        %506 = vmatpush1.msra.mxu0 %v395
        %507 = vmatprep.subr.mxu0 %v392
        %508 = vmatpush1.msra.mxu0 %v391
        %509 = vmatprep.subr.mxu0 0.0
        %510 = vmatpush2.msra.mxu0 0.0
        %511 = vmatprep.subr.mxu0 0.0
        %512 = vmatpush2.msra.mxu0 0.0
        %513 = vmatprep.subr.mxu0 0.0
        %514 = vmatpush2.msra.mxu0 0.0
        %515 = vmatprep.subr.mxu0 0.0
        %516 = vmatpush2.msra.mxu0 0.0
        %517 = vmatprep.subr.mxu0 0.0
        %518 = vmatpush2.msra.mxu0 0.0
        %519 = vmatprep.subr.mxu0 0.0
        %520 = vmatpush2.msra.mxu0 0.0
        %521 = vmatprep.subr.mxu0 0.0
        %522 = vmatpush2.msra.mxu0 0.0
        %523 = vmatprep.subr.mxu0 0.0
        %524 = vmatpush2.msra.mxu0 0.0
        %525 = vmatprep.subr.mxu0 0.0
        %526 = vmatpush2.msra.mxu0 0.0
        %527 = vmatprep.subr.mxu0 0.0
        %528 = vmatpush2.msra.mxu0 0.0
        %529 = vmatprep.subr.mxu0 0.0
        %530 = vmatpush2.msra.mxu0 0.0
        %531 = vmatprep.subr.mxu0 0.0
        %532 = vmatpush2.msra.mxu0 0.0
        %533 = vmatprep.subr.mxu0 0.0
        %534 = vmatpush2.msra.mxu0 0.0
        %535 = vmatprep.subr.mxu0 0.0
        %536 = vmatpush2.msra.mxu0 0.0
        %537 = vmatprep.subr.mxu0 0.0
        %538 = vmatpush2.msra.mxu0 0.0
        %539 = vmatprep.subr.mxu0 0.0
        %540 = vmatpush2.msra.mxu0 0.0
        %541 = vmatprep.mubr.f32.mxu0 0.0
        %542 = vmatmul.mubr.f32.gmra.mxu0 %v359
        %v543 = vpop.f32.mrf.mxu0
        %v544 = vadd.f32 %v460, %v543
        %v545 = vpop.f32.mrf.mxu0
        %v546 = vadd.f32 %v464, %v545
        %547 = vmatprep.mubr.f32.mxu0 0.0
        %548 = vmatmul.mubr.f32.gmra.mxu0 %v360
        %v549 = vpop.f32.mrf.mxu0
        %v550 = vadd.f32 %v460, %v549
        %v551 = vpop.f32.mrf.mxu0
        %v552 = vadd.f32 %v464, %v551
        %553 = vmatprep.mubr.f32.mxu0 0.0
        %554 = vmatmul.mubr.f32.gmra.mxu0 %v361
        %v555 = vpop.f32.mrf.mxu0
        %v556 = vadd.f32 %v460, %v555
        %v557 = vpop.f32.mrf.mxu0
        %v558 = vadd.f32 %v464, %v557
        %559 = vmatprep.mubr.f32.mxu0 0.0
        %560 = vmatmul.mubr.f32.gmra.mxu0 %v362
        %v561 = vpop.f32.mrf.mxu0
        %v562 = vadd.f32 %v460, %v561
        %v563 = vpop.f32.mrf.mxu0
        %v564 = vadd.f32 %v464, %v563
        %565 = vmatprep.mubr.f32.mxu0 0.0
        %566 = vmatmul.mubr.f32.gmra.mxu0 %v363
        %v567 = vpop.f32.mrf.mxu0
        %v568 = vadd.f32 %v460, %v567
        %v569 = vpop.f32.mrf.mxu0
        %v570 = vadd.f32 %v464, %v569
        %571 = vmatprep.mubr.f32.mxu0 0.0
        %572 = vmatmul.mubr.f32.gmra.mxu0 %v364
        %v573 = vpop.f32.mrf.mxu0
        %v574 = vadd.f32 %v460, %v573
        %v575 = vpop.f32.mrf.mxu0
        %v576 = vadd.f32 %v464, %v575
        %577 = vmatprep.mubr.f32.mxu0 0.0
        %578 = vmatmul.mubr.f32.gmra.mxu0 %v365
        %v579 = vpop.f32.mrf.mxu0
        %v580 = vadd.f32 %v460, %v579
        %v581 = vpop.f32.mrf.mxu0
        %v582 = vadd.f32 %v464, %v581
        %583 = vmatprep.mubr.f32.mxu0 0.0
        %584 = vmatmul.mubr.f32.gmra.mxu0 %v366
        %v585 = vpop.f32.mrf.mxu0
        %v586 = vadd.f32 %v460, %v585
        %v587 = vpop.f32.mrf.mxu0
        %v588 = vadd.f32 %v464, %v587
        %589 = vmatprep.mubr.f32.mxu0 0.0
        %590 = vmatmul.mubr.f32.gmra.mxu0 %v367
        %v591 = vpop.f32.mrf.mxu0
        %v592 = vadd.f32 %v460, %v591
        %v593 = vpop.f32.mrf.mxu0
        %v594 = vadd.f32 %v464, %v593
        %595 = vmatprep.mubr.f32.mxu0 0.0
        %596 = vmatmul.mubr.f32.gmra.mxu0 %v368
        %v597 = vpop.f32.mrf.mxu0
        %v598 = vadd.f32 %v460, %v597
        %v599 = vpop.f32.mrf.mxu0
        %v600 = vadd.f32 %v464, %v599
        %601 = vmatprep.mubr.f32.mxu0 0.0
        %602 = vmatmul.mubr.f32.gmra.mxu0 %v369
        %v603 = vpop.f32.mrf.mxu0
        %v604 = vadd.f32 %v460, %v603
        %v605 = vpop.f32.mrf.mxu0
        %v606 = vadd.f32 %v464, %v605
        %607 = vmatprep.mubr.f32.mxu0 0.0
        %608 = vmatmul.mubr.f32.gmra.mxu0 %v370
        %v609 = vpop.f32.mrf.mxu0
        %v610 = vadd.f32 %v460, %v609
        %v611 = vpop.f32.mrf.mxu0
        %v612 = vadd.f32 %v464, %v611
        %613 = vmatprep.mubr.f32.mxu0 0.0
        %614 = vmatmul.mubr.f32.gmra.mxu0 %v371
        %v615 = vpop.f32.mrf.mxu0
        %v616 = vadd.f32 %v460, %v615
        %v617 = vpop.f32.mrf.mxu0
        %v618 = vadd.f32 %v464, %v617
        %619 = vmatprep.mubr.f32.mxu0 0.0
        %620 = vmatmul.mubr.f32.gmra.mxu0 %v372
        %v621 = vpop.f32.mrf.mxu0
        %v622 = vadd.f32 %v460, %v621
        %v623 = vpop.f32.mrf.mxu0
        %v624 = vadd.f32 %v464, %v623
        %625 = vmatprep.mubr.f32.mxu0 0.0
        %626 = vmatmul.mubr.f32.gmra.mxu0 %v373
        %v627 = vpop.f32.mrf.mxu0
        %v628 = vadd.f32 %v460, %v627
        %v629 = vpop.f32.mrf.mxu0
        %v630 = vadd.f32 %v464, %v629
        %631 = vmatprep.mubr.f32.mxu0 0.0
        %632 = vmatmul.mubr.f32.gmra.mxu0 %v374
        %v633 = vpop.f32.mrf.mxu0
        %v634 = vadd.f32 %v460, %v633
        %v635 = vpop.f32.mrf.mxu0
        %v636 = vadd.f32 %v464, %v635
        %637 = vmatprep.mubr.f32.mxu0 0.0
        %638 = vmatmul.mubr.f32.gmra.mxu0 %v375
        %v639 = vpop.f32.mrf.mxu0
        %v640 = vadd.f32 %v460, %v639
        %v641 = vpop.f32.mrf.mxu0
        %v642 = vadd.f32 %v464, %v641
        %643 = vmatprep.mubr.f32.mxu0 0.0
        %644 = vmatmul.mubr.f32.gmra.mxu0 %v376
        %v645 = vpop.f32.mrf.mxu0
        %v646 = vadd.f32 %v460, %v645
        %v647 = vpop.f32.mrf.mxu0
        %v648 = vadd.f32 %v464, %v647
        %649 = vmatprep.mubr.f32.mxu0 0.0
        %650 = vmatmul.mubr.f32.gmra.mxu0 %v377
        %v651 = vpop.f32.mrf.mxu0
        %v652 = vadd.f32 %v460, %v651
        %v653 = vpop.f32.mrf.mxu0
        %v654 = vadd.f32 %v464, %v653
        %655 = vmatprep.mubr.f32.mxu0 0.0
        %656 = vmatmul.mubr.f32.gmra.mxu0 %v378
        %v657 = vpop.f32.mrf.mxu0
        %v658 = vadd.f32 %v460, %v657
        %v659 = vpop.f32.mrf.mxu0
        %v660 = vadd.f32 %v464, %v659
        %661 = vmatprep.mubr.f32.mxu0 0.0
        %662 = vmatmul.mubr.f32.gmra.mxu0 %v379
        %v663 = vpop.f32.mrf.mxu0
        %v664 = vadd.f32 %v460, %v663
        %v665 = vpop.f32.mrf.mxu0
        %v666 = vadd.f32 %v464, %v665
        %667 = vmatprep.mubr.f32.mxu0 0.0
        %668 = vmatmul.mubr.f32.gmra.mxu0 %v380
        %v669 = vpop.f32.mrf.mxu0
        %v670 = vadd.f32 %v460, %v669
        %v671 = vpop.f32.mrf.mxu0
        %v672 = vadd.f32 %v464, %v671
        %673 = vmatprep.mubr.f32.mxu0 0.0
        %674 = vmatmul.mubr.f32.gmra.mxu0 %v381
        %v675 = vpop.f32.mrf.mxu0
        %v676 = vadd.f32 %v460, %v675
        %v677 = vpop.f32.mrf.mxu0
        %v678 = vadd.f32 %v464, %v677
        %679 = vmatprep.mubr.f32.mxu0 0.0
        %680 = vmatmul.mubr.f32.gmra.mxu0 %v382
        %v681 = vpop.f32.mrf.mxu0
        %v682 = vadd.f32 %v460, %v681
        %v683 = vpop.f32.mrf.mxu0
        %v684 = vadd.f32 %v464, %v683
        %685 = vmatprep.mubr.f32.mxu0 0.0
        %686 = vmatmul.mubr.f32.gmra.mxu0 %v383
        %v687 = vpop.f32.mrf.mxu0
        %v688 = vadd.f32 %v460, %v687
        %v689 = vpop.f32.mrf.mxu0
        %v690 = vadd.f32 %v464, %v689
        %691 = vmatprep.mubr.f32.mxu0 0.0
        %692 = vmatmul.mubr.f32.gmra.mxu0 %v384
        %v693 = vpop.f32.mrf.mxu0
        %v694 = vadd.f32 %v460, %v693
        %v695 = vpop.f32.mrf.mxu0
        %v696 = vadd.f32 %v464, %v695
        %697 = vmatprep.mubr.f32.mxu0 0.0
        %698 = vmatmul.mubr.f32.gmra.mxu0 %v385
        %v699 = vpop.f32.mrf.mxu0
        %v700 = vadd.f32 %v460, %v699
        %v701 = vpop.f32.mrf.mxu0
        %v702 = vadd.f32 %v464, %v701
        %703 = vmatprep.mubr.f32.mxu0 0.0
        %704 = vmatmul.mubr.f32.gmra.mxu0 %v386
        %v705 = vpop.f32.mrf.mxu0
        %v706 = vadd.f32 %v460, %v705
        %v707 = vpop.f32.mrf.mxu0
        %v708 = vadd.f32 %v464, %v707
        %709 = vmatprep.mubr.f32.mxu0 0.0
        %710 = vmatmul.mubr.f32.gmra.mxu0 %v387
        %v711 = vpop.f32.mrf.mxu0
        %v712 = vadd.f32 %v460, %v711
        %v713 = vpop.f32.mrf.mxu0
        %v714 = vadd.f32 %v464, %v713
        %715 = vmatprep.mubr.f32.mxu0 0.0
        %716 = vmatmul.mubr.f32.gmra.mxu0 %v388
        %v717 = vpop.f32.mrf.mxu0
        %v718 = vadd.f32 %v460, %v717
        %v719 = vpop.f32.mrf.mxu0
        %v720 = vadd.f32 %v464, %v719
        %721 = vmatprep.mubr.f32.mxu0 0.0
        %722 = vmatmul.mubr.f32.gmra.mxu0 %v389
        %v723 = vpop.f32.mrf.mxu0
        %v724 = vadd.f32 %v460, %v723
        %v725 = vpop.f32.mrf.mxu0
        %v726 = vadd.f32 %v464, %v725
        %727 = vmatprep.mubr.f32.mxu0 0.0
        %728 = vmatmul.mubr.f32.gmra.mxu0 %v390
        %v729 = vpop.f32.mrf.mxu0
        %v730 = vadd.f32 %v460, %v729
        %v731 = vpop.f32.mrf.mxu0
        %v732 = vadd.f32 %v464, %v731
        %733 = vdwg.mxu0
        %734 = vmatprep.subr.mxu0 %v454
        %735 = vmatpush1.msra.mxu0 %v453
        %736 = vmatprep.subr.mxu0 %v450
        %737 = vmatpush1.msra.mxu0 %v449
        %738 = vmatprep.subr.mxu0 %v446
        %739 = vmatpush1.msra.mxu0 %v445
        %740 = vmatprep.subr.mxu0 %v442
        %741 = vmatpush1.msra.mxu0 %v441
        %742 = vmatprep.subr.mxu0 %v438
        %743 = vmatpush1.msra.mxu0 %v437
        %744 = vmatprep.subr.mxu0 %v434
        %745 = vmatpush1.msra.mxu0 %v433
        %746 = vmatprep.subr.mxu0 %v430
        %747 = vmatpush1.msra.mxu0 %v429
        %748 = vmatprep.subr.mxu0 %v426
        %749 = vmatpush1.msra.mxu0 %v425
        %750 = vmatprep.subr.mxu0 %v422
        %751 = vmatpush1.msra.mxu0 %v421
        %752 = vmatprep.subr.mxu0 %v418
        %753 = vmatpush1.msra.mxu0 %v417
        %754 = vmatprep.subr.mxu0 %v414
        %755 = vmatpush1.msra.mxu0 %v413
        %756 = vmatprep.subr.mxu0 %v410
        %757 = vmatpush1.msra.mxu0 %v409
        %758 = vmatprep.subr.mxu0 %v406
        %759 = vmatpush1.msra.mxu0 %v405
        %760 = vmatprep.subr.mxu0 %v402
        %761 = vmatpush1.msra.mxu0 %v401
        %762 = vmatprep.subr.mxu0 %v398
        %763 = vmatpush1.msra.mxu0 %v397
        %764 = vmatprep.subr.mxu0 %v394
        %765 = vmatpush1.msra.mxu0 %v393
        %766 = vmatprep.subr.mxu0 0.0
        %767 = vmatpush2.msra.mxu0 0.0
        %768 = vmatprep.subr.mxu0 0.0
        %769 = vmatpush2.msra.mxu0 0.0
        %770 = vmatprep.subr.mxu0 0.0
        %771 = vmatpush2.msra.mxu0 0.0
        %772 = vmatprep.subr.mxu0 0.0
        %773 = vmatpush2.msra.mxu0 0.0
        %774 = vmatprep.subr.mxu0 0.0
        %775 = vmatpush2.msra.mxu0 0.0
        %776 = vmatprep.subr.mxu0 0.0
        %777 = vmatpush2.msra.mxu0 0.0
        %778 = vmatprep.subr.mxu0 0.0
        %779 = vmatpush2.msra.mxu0 0.0
        %780 = vmatprep.subr.mxu0 0.0
        %781 = vmatpush2.msra.mxu0 0.0
        %782 = vmatprep.subr.mxu0 0.0
        %783 = vmatpush2.msra.mxu0 0.0
        %784 = vmatprep.subr.mxu0 0.0
        %785 = vmatpush2.msra.mxu0 0.0
        %786 = vmatprep.subr.mxu0 0.0
        %787 = vmatpush2.msra.mxu0 0.0
        %788 = vmatprep.subr.mxu0 0.0
        %789 = vmatpush2.msra.mxu0 0.0
        %790 = vmatprep.subr.mxu0 0.0
        %791 = vmatpush2.msra.mxu0 0.0
        %792 = vmatprep.subr.mxu0 0.0
        %793 = vmatpush2.msra.mxu0 0.0
        %794 = vmatprep.subr.mxu0 0.0
        %795 = vmatpush2.msra.mxu0 0.0
        %796 = vmatprep.subr.mxu0 0.0
        %797 = vmatpush2.msra.mxu0 0.0
        %798 = vmatprep.mubr.f32.mxu0 0.0
        %799 = vmatmul.mubr.f32.gmra.mxu0 %v359
        %v800 = vpop.f32.mrf.mxu0
        %v801 = vadd.f32 %v468, %v800
        %v802 = vpop.f32.mrf.mxu0
        %v803 = vadd.f32 %v472, %v802
        %804 = vmatprep.mubr.f32.mxu0 0.0
        %805 = vmatmul.mubr.f32.gmra.mxu0 %v360
        %v806 = vpop.f32.mrf.mxu0
        %v807 = vadd.f32 %v468, %v806
        %v808 = vpop.f32.mrf.mxu0
        %v809 = vadd.f32 %v472, %v808
        %810 = vmatprep.mubr.f32.mxu0 0.0
        %811 = vmatmul.mubr.f32.gmra.mxu0 %v361
        %v812 = vpop.f32.mrf.mxu0
        %v813 = vadd.f32 %v468, %v812
        %v814 = vpop.f32.mrf.mxu0
        %v815 = vadd.f32 %v472, %v814
        %816 = vmatprep.mubr.f32.mxu0 0.0
        %817 = vmatmul.mubr.f32.gmra.mxu0 %v362
        %v818 = vpop.f32.mrf.mxu0
        %v819 = vadd.f32 %v468, %v818
        %v820 = vpop.f32.mrf.mxu0
        %v821 = vadd.f32 %v472, %v820
        %822 = vmatprep.mubr.f32.mxu0 0.0
        %823 = vmatmul.mubr.f32.gmra.mxu0 %v363
        %v824 = vpop.f32.mrf.mxu0
        %v825 = vadd.f32 %v468, %v824
        %v826 = vpop.f32.mrf.mxu0
        %v827 = vadd.f32 %v472, %v826
        %828 = vmatprep.mubr.f32.mxu0 0.0
        %829 = vmatmul.mubr.f32.gmra.mxu0 %v364
        %v830 = vpop.f32.mrf.mxu0
        %v831 = vadd.f32 %v468, %v830
        %v832 = vpop.f32.mrf.mxu0
        %v833 = vadd.f32 %v472, %v832
        %834 = vmatprep.mubr.f32.mxu0 0.0
        %835 = vmatmul.mubr.f32.gmra.mxu0 %v365
        %v836 = vpop.f32.mrf.mxu0
        %v837 = vadd.f32 %v468, %v836
        %v838 = vpop.f32.mrf.mxu0
        %v839 = vadd.f32 %v472, %v838
        %840 = vmatprep.mubr.f32.mxu0 0.0
        %841 = vmatmul.mubr.f32.gmra.mxu0 %v366
        %v842 = vpop.f32.mrf.mxu0
        %v843 = vadd.f32 %v468, %v842
        %v844 = vpop.f32.mrf.mxu0
        %v845 = vadd.f32 %v472, %v844
        %846 = vmatprep.mubr.f32.mxu0 0.0
        %847 = vmatmul.mubr.f32.gmra.mxu0 %v367
        %v848 = vpop.f32.mrf.mxu0
        %v849 = vadd.f32 %v468, %v848
        %v850 = vpop.f32.mrf.mxu0
        %v851 = vadd.f32 %v472, %v850
        %852 = vmatprep.mubr.f32.mxu0 0.0
        %853 = vmatmul.mubr.f32.gmra.mxu0 %v368
        %v854 = vpop.f32.mrf.mxu0
        %v855 = vadd.f32 %v468, %v854
        %v856 = vpop.f32.mrf.mxu0
        %v857 = vadd.f32 %v472, %v856
        %858 = vmatprep.mubr.f32.mxu0 0.0
        %859 = vmatmul.mubr.f32.gmra.mxu0 %v369
        %v860 = vpop.f32.mrf.mxu0
        %v861 = vadd.f32 %v468, %v860
        %v862 = vpop.f32.mrf.mxu0
        %v863 = vadd.f32 %v472, %v862
        %864 = vmatprep.mubr.f32.mxu0 0.0
        %865 = vmatmul.mubr.f32.gmra.mxu0 %v370
        %v866 = vpop.f32.mrf.mxu0
        %v867 = vadd.f32 %v468, %v866
        %v868 = vpop.f32.mrf.mxu0
        %v869 = vadd.f32 %v472, %v868
        %870 = vmatprep.mubr.f32.mxu0 0.0
        %871 = vmatmul.mubr.f32.gmra.mxu0 %v371
        %v872 = vpop.f32.mrf.mxu0
        %v873 = vadd.f32 %v468, %v872
        %v874 = vpop.f32.mrf.mxu0
        %v875 = vadd.f32 %v472, %v874
        %876 = vmatprep.mubr.f32.mxu0 0.0
        %877 = vmatmul.mubr.f32.gmra.mxu0 %v372
        %v878 = vpop.f32.mrf.mxu0
        %v879 = vadd.f32 %v468, %v878
        %v880 = vpop.f32.mrf.mxu0
        %v881 = vadd.f32 %v472, %v880
        %882 = vmatprep.mubr.f32.mxu0 0.0
        %883 = vmatmul.mubr.f32.gmra.mxu0 %v373
        %v884 = vpop.f32.mrf.mxu0
        %v885 = vadd.f32 %v468, %v884
        %v886 = vpop.f32.mrf.mxu0
        %v887 = vadd.f32 %v472, %v886
        %888 = vmatprep.mubr.f32.mxu0 0.0
        %889 = vmatmul.mubr.f32.gmra.mxu0 %v374
        %v890 = vpop.f32.mrf.mxu0
        %v891 = vadd.f32 %v468, %v890
        %v892 = vpop.f32.mrf.mxu0
        %v893 = vadd.f32 %v472, %v892
        %894 = vmatprep.mubr.f32.mxu0 0.0
        %895 = vmatmul.mubr.f32.gmra.mxu0 %v375
        %v896 = vpop.f32.mrf.mxu0
        %v897 = vadd.f32 %v468, %v896
        %v898 = vpop.f32.mrf.mxu0
        %v899 = vadd.f32 %v472, %v898
        %900 = vmatprep.mubr.f32.mxu0 0.0
        %901 = vmatmul.mubr.f32.gmra.mxu0 %v376
        %v902 = vpop.f32.mrf.mxu0
        %v903 = vadd.f32 %v468, %v902
        %v904 = vpop.f32.mrf.mxu0
        %v905 = vadd.f32 %v472, %v904
        %906 = vmatprep.mubr.f32.mxu0 0.0
        %907 = vmatmul.mubr.f32.gmra.mxu0 %v377
        %v908 = vpop.f32.mrf.mxu0
        %v909 = vadd.f32 %v468, %v908
        %v910 = vpop.f32.mrf.mxu0
        %v911 = vadd.f32 %v472, %v910
        %912 = vmatprep.mubr.f32.mxu0 0.0
        %913 = vmatmul.mubr.f32.gmra.mxu0 %v378
        %v914 = vpop.f32.mrf.mxu0
        %v915 = vadd.f32 %v468, %v914
        %v916 = vpop.f32.mrf.mxu0
        %v917 = vadd.f32 %v472, %v916
        %918 = vmatprep.mubr.f32.mxu0 0.0
        %919 = vmatmul.mubr.f32.gmra.mxu0 %v379
        %v920 = vpop.f32.mrf.mxu0
        %v921 = vadd.f32 %v468, %v920
        %v922 = vpop.f32.mrf.mxu0
        %v923 = vadd.f32 %v472, %v922
        %924 = vmatprep.mubr.f32.mxu0 0.0
        %925 = vmatmul.mubr.f32.gmra.mxu0 %v380
        %v926 = vpop.f32.mrf.mxu0
        %v927 = vadd.f32 %v468, %v926
        %v928 = vpop.f32.mrf.mxu0
        %v929 = vadd.f32 %v472, %v928
        %930 = vmatprep.mubr.f32.mxu0 0.0
        %931 = vmatmul.mubr.f32.gmra.mxu0 %v381
        %v932 = vpop.f32.mrf.mxu0
        %v933 = vadd.f32 %v468, %v932
        %v934 = vpop.f32.mrf.mxu0
        %v935 = vadd.f32 %v472, %v934
        %936 = vmatprep.mubr.f32.mxu0 0.0
        %937 = vmatmul.mubr.f32.gmra.mxu0 %v382
        %v938 = vpop.f32.mrf.mxu0
        %v939 = vadd.f32 %v468, %v938
        %v940 = vpop.f32.mrf.mxu0
        %v941 = vadd.f32 %v472, %v940
        %942 = vmatprep.mubr.f32.mxu0 0.0
        %943 = vmatmul.mubr.f32.gmra.mxu0 %v383
        %v944 = vpop.f32.mrf.mxu0
        %v945 = vadd.f32 %v468, %v944
        %v946 = vpop.f32.mrf.mxu0
        %v947 = vadd.f32 %v472, %v946
        %948 = vmatprep.mubr.f32.mxu0 0.0
        %949 = vmatmul.mubr.f32.gmra.mxu0 %v384
        %v950 = vpop.f32.mrf.mxu0
        %v951 = vadd.f32 %v468, %v950
        %v952 = vpop.f32.mrf.mxu0
        %v953 = vadd.f32 %v472, %v952
        %954 = vmatprep.mubr.f32.mxu0 0.0
        %955 = vmatmul.mubr.f32.gmra.mxu0 %v385
        %v956 = vpop.f32.mrf.mxu0
        %v957 = vadd.f32 %v468, %v956
        %v958 = vpop.f32.mrf.mxu0
        %v959 = vadd.f32 %v472, %v958
        %960 = vmatprep.mubr.f32.mxu0 0.0
        %961 = vmatmul.mubr.f32.gmra.mxu0 %v386
        %v962 = vpop.f32.mrf.mxu0
        %v963 = vadd.f32 %v468, %v962
        %v964 = vpop.f32.mrf.mxu0
        %v965 = vadd.f32 %v472, %v964
        %966 = vmatprep.mubr.f32.mxu0 0.0
        %967 = vmatmul.mubr.f32.gmra.mxu0 %v387
        %v968 = vpop.f32.mrf.mxu0
        %v969 = vadd.f32 %v468, %v968
        %v970 = vpop.f32.mrf.mxu0
        %v971 = vadd.f32 %v472, %v970
        %972 = vmatprep.mubr.f32.mxu0 0.0
        %973 = vmatmul.mubr.f32.gmra.mxu0 %v388
        %v974 = vpop.f32.mrf.mxu0
        %v975 = vadd.f32 %v468, %v974
        %v976 = vpop.f32.mrf.mxu0
        %v977 = vadd.f32 %v472, %v976
        %978 = vmatprep.mubr.f32.mxu0 0.0
        %979 = vmatmul.mubr.f32.gmra.mxu0 %v389
        %v980 = vpop.f32.mrf.mxu0
        %v981 = vadd.f32 %v468, %v980
        %v982 = vpop.f32.mrf.mxu0
        %v983 = vadd.f32 %v472, %v982
        %984 = vmatprep.mubr.f32.mxu0 0.0
        %985 = vmatmul.mubr.f32.gmra.mxu0 %v390
        %v986 = vpop.f32.mrf.mxu0
        %v987 = vadd.f32 %v468, %v986
        %v988 = vpop.f32.mrf.mxu0
        %v989 = vadd.f32 %v472, %v988
        %990 = vdwg.mxu0
        %v991 = vmul.f32 %v544, 0.5
        %v992 = vmul.f32 %v546, 0.5
        %v993 = vmul.f32 %v801, 0.5
        %v994 = vmul.f32 %v803, 0.5
        %v995 = vmul.f32 %v550, 0.5
        %v996 = vmul.f32 %v552, 0.5
        %v997 = vmul.f32 %v807, 0.5
        %v998 = vmul.f32 %v809, 0.5
        %v999 = vmul.f32 %v556, 0.5
        %v1000 = vmul.f32 %v558, 0.5
        %v1001 = vmul.f32 %v813, 0.5
        %v1002 = vmul.f32 %v815, 0.5
        %v1003 = vmul.f32 %v562, 0.5
        %v1004 = vmul.f32 %v564, 0.5
        %v1005 = vmul.f32 %v819, 0.5
        %v1006 = vmul.f32 %v821, 0.5
        %v1007 = vmul.f32 %v568, 0.5
        %v1008 = vmul.f32 %v570, 0.5
        %v1009 = vmul.f32 %v825, 0.5
        %v1010 = vmul.f32 %v827, 0.5
        %v1011 = vmul.f32 %v574, 0.5
        %v1012 = vmul.f32 %v576, 0.5
        %v1013 = vmul.f32 %v831, 0.5
        %v1014 = vmul.f32 %v833, 0.5
        %v1015 = vmul.f32 %v580, 0.5
        %v1016 = vmul.f32 %v582, 0.5
        %v1017 = vmul.f32 %v837, 0.5
        %v1018 = vmul.f32 %v839, 0.5
        %v1019 = vmul.f32 %v586, 0.5
        %v1020 = vmul.f32 %v588, 0.5
        %v1021 = vmul.f32 %v843, 0.5
        %v1022 = vmul.f32 %v845, 0.5
        %v1023 = vmul.f32 %v592, 0.5
        %v1024 = vmul.f32 %v594, 0.5
        %v1025 = vmul.f32 %v849, 0.5
        %v1026 = vmul.f32 %v851, 0.5
        %v1027 = vmul.f32 %v598, 0.5
        %v1028 = vmul.f32 %v600, 0.5
        %v1029 = vmul.f32 %v855, 0.5
        %v1030 = vmul.f32 %v857, 0.5
        %v1031 = vmul.f32 %v604, 0.5
        %v1032 = vmul.f32 %v606, 0.5
        %v1033 = vmul.f32 %v861, 0.5
        %v1034 = vmul.f32 %v863, 0.5
        %v1035 = vmul.f32 %v610, 0.5
        %v1036 = vmul.f32 %v612, 0.5
        %v1037 = vmul.f32 %v867, 0.5
        %v1038 = vmul.f32 %v869, 0.5
        %v1039 = vmul.f32 %v616, 0.5
        %v1040 = vmul.f32 %v618, 0.5
        %v1041 = vmul.f32 %v873, 0.5
        %v1042 = vmul.f32 %v875, 0.5
        %v1043 = vmul.f32 %v622, 0.5
        %v1044 = vmul.f32 %v624, 0.5
        %v1045 = vmul.f32 %v879, 0.5
        %v1046 = vmul.f32 %v881, 0.5
        %v1047 = vmul.f32 %v628, 0.5
        %v1048 = vmul.f32 %v630, 0.5
        %v1049 = vmul.f32 %v885, 0.5
        %v1050 = vmul.f32 %v887, 0.5
        %v1051 = vmul.f32 %v634, 0.5
        %v1052 = vmul.f32 %v636, 0.5
        %v1053 = vmul.f32 %v891, 0.5
        %v1054 = vmul.f32 %v893, 0.5
        %v1055 = vmul.f32 %v640, 0.5
        %v1056 = vmul.f32 %v642, 0.5
        %v1057 = vmul.f32 %v897, 0.5
        %v1058 = vmul.f32 %v899, 0.5
        %v1059 = vmul.f32 %v646, 0.5
        %v1060 = vmul.f32 %v648, 0.5
        %v1061 = vmul.f32 %v903, 0.5
        %v1062 = vmul.f32 %v905, 0.5
        %v1063 = vmul.f32 %v652, 0.5
        %v1064 = vmul.f32 %v654, 0.5
        %v1065 = vmul.f32 %v909, 0.5
        %v1066 = vmul.f32 %v911, 0.5
        %v1067 = vmul.f32 %v658, 0.5
        %v1068 = vmul.f32 %v660, 0.5
        %v1069 = vmul.f32 %v915, 0.5
        %v1070 = vmul.f32 %v917, 0.5
        %v1071 = vmul.f32 %v664, 0.5
        %v1072 = vmul.f32 %v666, 0.5
        %v1073 = vmul.f32 %v921, 0.5
        %v1074 = vmul.f32 %v923, 0.5
        %v1075 = vmul.f32 %v670, 0.5
        %v1076 = vmul.f32 %v672, 0.5
        %v1077 = vmul.f32 %v927, 0.5
        %v1078 = vmul.f32 %v929, 0.5
        %v1079 = vmul.f32 %v676, 0.5
        %v1080 = vmul.f32 %v678, 0.5
        %v1081 = vmul.f32 %v933, 0.5
        %v1082 = vmul.f32 %v935, 0.5
        %v1083 = vmul.f32 %v682, 0.5
        %v1084 = vmul.f32 %v684, 0.5
        %v1085 = vmul.f32 %v939, 0.5
        %v1086 = vmul.f32 %v941, 0.5
        %v1087 = vmul.f32 %v688, 0.5
        %v1088 = vmul.f32 %v690, 0.5
        %v1089 = vmul.f32 %v945, 0.5
        %v1090 = vmul.f32 %v947, 0.5
        %v1091 = vmul.f32 %v694, 0.5
        %v1092 = vmul.f32 %v696, 0.5
        %v1093 = vmul.f32 %v951, 0.5
        %v1094 = vmul.f32 %v953, 0.5
        %v1095 = vmul.f32 %v700, 0.5
        %v1096 = vmul.f32 %v702, 0.5
        %v1097 = vmul.f32 %v957, 0.5
        %v1098 = vmul.f32 %v959, 0.5
        %v1099 = vmul.f32 %v706, 0.5
        %v1100 = vmul.f32 %v708, 0.5
        %v1101 = vmul.f32 %v963, 0.5
        %v1102 = vmul.f32 %v965, 0.5
        %v1103 = vmul.f32 %v712, 0.5
        %v1104 = vmul.f32 %v714, 0.5
        %v1105 = vmul.f32 %v969, 0.5
        %v1106 = vmul.f32 %v971, 0.5
        %v1107 = vmul.f32 %v718, 0.5
        %v1108 = vmul.f32 %v720, 0.5
        %v1109 = vmul.f32 %v975, 0.5
        %v1110 = vmul.f32 %v977, 0.5
        %v1111 = vmul.f32 %v724, 0.5
        %v1112 = vmul.f32 %v726, 0.5
        %v1113 = vmul.f32 %v981, 0.5
        %v1114 = vmul.f32 %v983, 0.5
        %v1115 = vmul.f32 %v730, 0.5
        %v1116 = vmul.f32 %v732, 0.5
        %v1117 = vmul.f32 %v987, 0.5
        %v1118 = vmul.f32 %v989, 0.5
        %v1119 = vmul.f32 %v544, 0.70710677
        %v1120 = vmul.f32 %v546, 0.70710677
        %v1121 = vmul.f32 %v801, 0.70710677
        %v1122 = vmul.f32 %v803, 0.70710677
        %v1123 = vmul.f32 %v550, 0.70710677
        %v1124 = vmul.f32 %v552, 0.70710677
        %v1125 = vmul.f32 %v807, 0.70710677
        %v1126 = vmul.f32 %v809, 0.70710677
        %v1127 = vmul.f32 %v556, 0.70710677
        %v1128 = vmul.f32 %v558, 0.70710677
        %v1129 = vmul.f32 %v813, 0.70710677
        %v1130 = vmul.f32 %v815, 0.70710677
        %v1131 = vmul.f32 %v562, 0.70710677
        %v1132 = vmul.f32 %v564, 0.70710677
        %v1133 = vmul.f32 %v819, 0.70710677
        %v1134 = vmul.f32 %v821, 0.70710677
        %v1135 = vmul.f32 %v568, 0.70710677
        %v1136 = vmul.f32 %v570, 0.70710677
        %v1137 = vmul.f32 %v825, 0.70710677
        %v1138 = vmul.f32 %v827, 0.70710677
        %v1139 = vmul.f32 %v574, 0.70710677
        %v1140 = vmul.f32 %v576, 0.70710677
        %v1141 = vmul.f32 %v831, 0.70710677
        %v1142 = vmul.f32 %v833, 0.70710677
        %v1143 = vmul.f32 %v580, 0.70710677
        %v1144 = vmul.f32 %v582, 0.70710677
        %v1145 = vmul.f32 %v837, 0.70710677
        %v1146 = vmul.f32 %v839, 0.70710677
        %v1147 = vmul.f32 %v586, 0.70710677
        %v1148 = vmul.f32 %v588, 0.70710677
        %v1149 = vmul.f32 %v843, 0.70710677
        %v1150 = vmul.f32 %v845, 0.70710677
        %v1151 = vmul.f32 %v592, 0.70710677
        %v1152 = vmul.f32 %v594, 0.70710677
        %v1153 = vmul.f32 %v849, 0.70710677
        %v1154 = vmul.f32 %v851, 0.70710677
        %v1155 = vmul.f32 %v598, 0.70710677
        %v1156 = vmul.f32 %v600, 0.70710677
        %v1157 = vmul.f32 %v855, 0.70710677
        %v1158 = vmul.f32 %v857, 0.70710677
        %v1159 = vmul.f32 %v604, 0.70710677
        %v1160 = vmul.f32 %v606, 0.70710677
        %v1161 = vmul.f32 %v861, 0.70710677
        %v1162 = vmul.f32 %v863, 0.70710677
        %v1163 = vmul.f32 %v610, 0.70710677
        %v1164 = vmul.f32 %v612, 0.70710677
        %v1165 = vmul.f32 %v867, 0.70710677
        %v1166 = vmul.f32 %v869, 0.70710677
        %v1167 = vmul.f32 %v616, 0.70710677
        %v1168 = vmul.f32 %v618, 0.70710677
        %v1169 = vmul.f32 %v873, 0.70710677
        %v1170 = vmul.f32 %v875, 0.70710677
        %v1171 = vmul.f32 %v622, 0.70710677
        %v1172 = vmul.f32 %v624, 0.70710677
        %v1173 = vmul.f32 %v879, 0.70710677
        %v1174 = vmul.f32 %v881, 0.70710677
        %v1175 = vmul.f32 %v628, 0.70710677
        %v1176 = vmul.f32 %v630, 0.70710677
        %v1177 = vmul.f32 %v885, 0.70710677
        %v1178 = vmul.f32 %v887, 0.70710677
        %v1179 = vmul.f32 %v634, 0.70710677
        %v1180 = vmul.f32 %v636, 0.70710677
        %v1181 = vmul.f32 %v891, 0.70710677
        %v1182 = vmul.f32 %v893, 0.70710677
        %v1183 = vmul.f32 %v640, 0.70710677
        %v1184 = vmul.f32 %v642, 0.70710677
        %v1185 = vmul.f32 %v897, 0.70710677
        %v1186 = vmul.f32 %v899, 0.70710677
        %v1187 = vmul.f32 %v646, 0.70710677
        %v1188 = vmul.f32 %v648, 0.70710677
        %v1189 = vmul.f32 %v903, 0.70710677
        %v1190 = vmul.f32 %v905, 0.70710677
        %v1191 = vmul.f32 %v652, 0.70710677
        %v1192 = vmul.f32 %v654, 0.70710677
        %v1193 = vmul.f32 %v909, 0.70710677
        %v1194 = vmul.f32 %v911, 0.70710677
        %v1195 = vmul.f32 %v658, 0.70710677
        %v1196 = vmul.f32 %v660, 0.70710677
        %v1197 = vmul.f32 %v915, 0.70710677
        %v1198 = vmul.f32 %v917, 0.70710677
        %v1199 = vmul.f32 %v664, 0.70710677
        %v1200 = vmul.f32 %v666, 0.70710677
        %v1201 = vmul.f32 %v921, 0.70710677
        %v1202 = vmul.f32 %v923, 0.70710677
        %v1203 = vmul.f32 %v670, 0.70710677
        %v1204 = vmul.f32 %v672, 0.70710677
        %v1205 = vmul.f32 %v927, 0.70710677
        %v1206 = vmul.f32 %v929, 0.70710677
        %v1207 = vmul.f32 %v676, 0.70710677
        %v1208 = vmul.f32 %v678, 0.70710677
        %v1209 = vmul.f32 %v933, 0.70710677
        %v1210 = vmul.f32 %v935, 0.70710677
        %v1211 = vmul.f32 %v682, 0.70710677
        %v1212 = vmul.f32 %v684, 0.70710677
        %v1213 = vmul.f32 %v939, 0.70710677
        %v1214 = vmul.f32 %v941, 0.70710677
        %v1215 = vmul.f32 %v688, 0.70710677
        %v1216 = vmul.f32 %v690, 0.70710677
        %v1217 = vmul.f32 %v945, 0.70710677
        %v1218 = vmul.f32 %v947, 0.70710677
        %v1219 = vmul.f32 %v694, 0.70710677
        %v1220 = vmul.f32 %v696, 0.70710677
        %v1221 = vmul.f32 %v951, 0.70710677
        %v1222 = vmul.f32 %v953, 0.70710677
        %v1223 = vmul.f32 %v700, 0.70710677
        %v1224 = vmul.f32 %v702, 0.70710677
        %v1225 = vmul.f32 %v957, 0.70710677
        %v1226 = vmul.f32 %v959, 0.70710677
        %v1227 = vmul.f32 %v706, 0.70710677
        %v1228 = vmul.f32 %v708, 0.70710677
        %v1229 = vmul.f32 %v963, 0.70710677
        %v1230 = vmul.f32 %v965, 0.70710677
        %v1231 = vmul.f32 %v712, 0.70710677
        %v1232 = vmul.f32 %v714, 0.70710677
        %v1233 = vmul.f32 %v969, 0.70710677
        %v1234 = vmul.f32 %v971, 0.70710677
        %v1235 = vmul.f32 %v718, 0.70710677
        %v1236 = vmul.f32 %v720, 0.70710677
        %v1237 = vmul.f32 %v975, 0.70710677
        %v1238 = vmul.f32 %v977, 0.70710677
        %v1239 = vmul.f32 %v724, 0.70710677
        %v1240 = vmul.f32 %v726, 0.70710677
        %v1241 = vmul.f32 %v981, 0.70710677
        %v1242 = vmul.f32 %v983, 0.70710677
        %v1243 = vmul.f32 %v730, 0.70710677
        %v1244 = vmul.f32 %v732, 0.70710677
        %v1245 = vmul.f32 %v987, 0.70710677
        %v1246 = vmul.f32 %v989, 0.70710677
        %v1247 = verf.f32.pop %v1119
        %v1248 = verf.f32.pop %v1120
        %v1249 = verf.f32.pop %v1121
        %v1250 = verf.f32.pop %v1122
        %v1251 = verf.f32.pop %v1123
        %v1252 = verf.f32.pop %v1124
        %v1253 = verf.f32.pop %v1125
        %v1254 = verf.f32.pop %v1126
        %v1255 = verf.f32.pop %v1127
        %v1256 = verf.f32.pop %v1128
        %v1257 = verf.f32.pop %v1129
        %v1258 = verf.f32.pop %v1130
        %v1259 = verf.f32.pop %v1131
        %v1260 = verf.f32.pop %v1132
        %v1261 = verf.f32.pop %v1133
        %v1262 = verf.f32.pop %v1134
        %v1263 = verf.f32.pop %v1135
        %v1264 = verf.f32.pop %v1136
        %v1265 = verf.f32.pop %v1137
        %v1266 = verf.f32.pop %v1138
        %v1267 = verf.f32.pop %v1139
        %v1268 = verf.f32.pop %v1140
        %v1269 = verf.f32.pop %v1141
        %v1270 = verf.f32.pop %v1142
        %v1271 = verf.f32.pop %v1143
        %v1272 = verf.f32.pop %v1144
        %v1273 = verf.f32.pop %v1145
        %v1274 = verf.f32.pop %v1146
        %v1275 = verf.f32.pop %v1147
        %v1276 = verf.f32.pop %v1148
        %v1277 = verf.f32.pop %v1149
        %v1278 = verf.f32.pop %v1150
        %v1279 = verf.f32.pop %v1151
        %v1280 = verf.f32.pop %v1152
        %v1281 = verf.f32.pop %v1153
        %v1282 = verf.f32.pop %v1154
        %v1283 = verf.f32.pop %v1155
        %v1284 = verf.f32.pop %v1156
        %v1285 = verf.f32.pop %v1157
        %v1286 = verf.f32.pop %v1158
        %v1287 = verf.f32.pop %v1159
        %v1288 = verf.f32.pop %v1160
        %v1289 = verf.f32.pop %v1161
        %v1290 = verf.f32.pop %v1162
        %v1291 = verf.f32.pop %v1163
        %v1292 = verf.f32.pop %v1164
        %v1293 = verf.f32.pop %v1165
        %v1294 = verf.f32.pop %v1166
        %v1295 = verf.f32.pop %v1167
        %v1296 = verf.f32.pop %v1168
        %v1297 = verf.f32.pop %v1169
        %v1298 = verf.f32.pop %v1170
        %v1299 = verf.f32.pop %v1171
        %v1300 = verf.f32.pop %v1172
        %v1301 = verf.f32.pop %v1173
        %v1302 = verf.f32.pop %v1174
        %v1303 = verf.f32.pop %v1175
        %v1304 = verf.f32.pop %v1176
        %v1305 = verf.f32.pop %v1177
        %v1306 = verf.f32.pop %v1178
        %v1307 = verf.f32.pop %v1179
        %v1308 = verf.f32.pop %v1180
        %v1309 = verf.f32.pop %v1181
        %v1310 = verf.f32.pop %v1182
        %v1311 = verf.f32.pop %v1183
        %v1312 = verf.f32.pop %v1184
        %v1313 = verf.f32.pop %v1185
        %v1314 = verf.f32.pop %v1186
        %v1315 = verf.f32.pop %v1187
        %v1316 = verf.f32.pop %v1188
        %v1317 = verf.f32.pop %v1189
        %v1318 = verf.f32.pop %v1190
        %v1319 = verf.f32.pop %v1191
        %v1320 = verf.f32.pop %v1192
        %v1321 = verf.f32.pop %v1193
        %v1322 = verf.f32.pop %v1194
        %v1323 = verf.f32.pop %v1195
        %v1324 = verf.f32.pop %v1196
        %v1325 = verf.f32.pop %v1197
        %v1326 = verf.f32.pop %v1198
        %v1327 = verf.f32.pop %v1199
        %v1328 = verf.f32.pop %v1200
        %v1329 = verf.f32.pop %v1201
        %v1330 = verf.f32.pop %v1202
        %v1331 = verf.f32.pop %v1203
        %v1332 = verf.f32.pop %v1204
        %v1333 = verf.f32.pop %v1205
        %v1334 = verf.f32.pop %v1206
        %v1335 = verf.f32.pop %v1207
        %v1336 = verf.f32.pop %v1208
        %v1337 = verf.f32.pop %v1209
        %v1338 = verf.f32.pop %v1210
        %v1339 = verf.f32.pop %v1211
        %v1340 = verf.f32.pop %v1212
        %v1341 = verf.f32.pop %v1213
        %v1342 = verf.f32.pop %v1214
        %v1343 = verf.f32.pop %v1215
        %v1344 = verf.f32.pop %v1216
        %v1345 = verf.f32.pop %v1217
        %v1346 = verf.f32.pop %v1218
        %v1347 = verf.f32.pop %v1219
        %v1348 = verf.f32.pop %v1220
        %v1349 = verf.f32.pop %v1221
        %v1350 = verf.f32.pop %v1222
        %v1351 = verf.f32.pop %v1223
        %v1352 = verf.f32.pop %v1224
        %v1353 = verf.f32.pop %v1225
        %v1354 = verf.f32.pop %v1226
        %v1355 = verf.f32.pop %v1227
        %v1356 = verf.f32.pop %v1228
        %v1357 = verf.f32.pop %v1229
        %v1358 = verf.f32.pop %v1230
        %v1359 = verf.f32.pop %v1231
        %v1360 = verf.f32.pop %v1232
        %v1361 = verf.f32.pop %v1233
        %v1362 = verf.f32.pop %v1234
        %v1363 = verf.f32.pop %v1235
        %v1364 = verf.f32.pop %v1236
        %v1365 = verf.f32.pop %v1237
        %v1366 = verf.f32.pop %v1238
        %v1367 = verf.f32.pop %v1239
        %v1368 = verf.f32.pop %v1240
        %v1369 = verf.f32.pop %v1241
        %v1370 = verf.f32.pop %v1242
        %v1371 = verf.f32.pop %v1243
        %v1372 = verf.f32.pop %v1244
        %v1373 = verf.f32.pop %v1245
        %v1374 = verf.f32.pop %v1246
        %v1375 = vadd.f32 %v1247, 1.0
        %v1376 = vadd.f32 %v1248, 1.0
        %v1377 = vadd.f32 %v1249, 1.0
        %v1378 = vadd.f32 %v1250, 1.0
        %v1379 = vadd.f32 %v1251, 1.0
        %v1380 = vadd.f32 %v1252, 1.0
        %v1381 = vadd.f32 %v1253, 1.0
        %v1382 = vadd.f32 %v1254, 1.0
        %v1383 = vadd.f32 %v1255, 1.0
        %v1384 = vadd.f32 %v1256, 1.0
        %v1385 = vadd.f32 %v1257, 1.0
        %v1386 = vadd.f32 %v1258, 1.0
        %v1387 = vadd.f32 %v1259, 1.0
        %v1388 = vadd.f32 %v1260, 1.0
        %v1389 = vadd.f32 %v1261, 1.0
        %v1390 = vadd.f32 %v1262, 1.0
        %v1391 = vadd.f32 %v1263, 1.0
        %v1392 = vadd.f32 %v1264, 1.0
        %v1393 = vadd.f32 %v1265, 1.0
        %v1394 = vadd.f32 %v1266, 1.0
        %v1395 = vadd.f32 %v1267, 1.0
        %v1396 = vadd.f32 %v1268, 1.0
        %v1397 = vadd.f32 %v1269, 1.0
        %v1398 = vadd.f32 %v1270, 1.0
        %v1399 = vadd.f32 %v1271, 1.0
        %v1400 = vadd.f32 %v1272, 1.0
        %v1401 = vadd.f32 %v1273, 1.0
        %v1402 = vadd.f32 %v1274, 1.0
        %v1403 = vadd.f32 %v1275, 1.0
        %v1404 = vadd.f32 %v1276, 1.0
        %v1405 = vadd.f32 %v1277, 1.0
        %v1406 = vadd.f32 %v1278, 1.0
        %v1407 = vadd.f32 %v1279, 1.0
        %v1408 = vadd.f32 %v1280, 1.0
        %v1409 = vadd.f32 %v1281, 1.0
        %v1410 = vadd.f32 %v1282, 1.0
        %v1411 = vadd.f32 %v1283, 1.0
        %v1412 = vadd.f32 %v1284, 1.0
        %v1413 = vadd.f32 %v1285, 1.0
        %v1414 = vadd.f32 %v1286, 1.0
        %v1415 = vadd.f32 %v1287, 1.0
        %v1416 = vadd.f32 %v1288, 1.0
        %v1417 = vadd.f32 %v1289, 1.0
        %v1418 = vadd.f32 %v1290, 1.0
        %v1419 = vadd.f32 %v1291, 1.0
        %v1420 = vadd.f32 %v1292, 1.0
        %v1421 = vadd.f32 %v1293, 1.0
        %v1422 = vadd.f32 %v1294, 1.0
        %v1423 = vadd.f32 %v1295, 1.0
        %v1424 = vadd.f32 %v1296, 1.0
        %v1425 = vadd.f32 %v1297, 1.0
        %v1426 = vadd.f32 %v1298, 1.0
        %v1427 = vadd.f32 %v1299, 1.0
        %v1428 = vadd.f32 %v1300, 1.0
        %v1429 = vadd.f32 %v1301, 1.0
        %v1430 = vadd.f32 %v1302, 1.0
        %v1431 = vadd.f32 %v1303, 1.0
        %v1432 = vadd.f32 %v1304, 1.0
        %v1433 = vadd.f32 %v1305, 1.0
        %v1434 = vadd.f32 %v1306, 1.0
        %v1435 = vadd.f32 %v1307, 1.0
        %v1436 = vadd.f32 %v1308, 1.0
        %v1437 = vadd.f32 %v1309, 1.0
        %v1438 = vadd.f32 %v1310, 1.0
        %v1439 = vadd.f32 %v1311, 1.0
        %v1440 = vadd.f32 %v1312, 1.0
        %v1441 = vadd.f32 %v1313, 1.0
        %v1442 = vadd.f32 %v1314, 1.0
        %v1443 = vadd.f32 %v1315, 1.0
        %v1444 = vadd.f32 %v1316, 1.0
        %v1445 = vadd.f32 %v1317, 1.0
        %v1446 = vadd.f32 %v1318, 1.0
        %v1447 = vadd.f32 %v1319, 1.0
        %v1448 = vadd.f32 %v1320, 1.0
        %v1449 = vadd.f32 %v1321, 1.0
        %v1450 = vadd.f32 %v1322, 1.0
        %v1451 = vadd.f32 %v1323, 1.0
        %v1452 = vadd.f32 %v1324, 1.0
        %v1453 = vadd.f32 %v1325, 1.0
        %v1454 = vadd.f32 %v1326, 1.0
        %v1455 = vadd.f32 %v1327, 1.0
        %v1456 = vadd.f32 %v1328, 1.0
        %v1457 = vadd.f32 %v1329, 1.0
        %v1458 = vadd.f32 %v1330, 1.0
        %v1459 = vadd.f32 %v1331, 1.0
        %v1460 = vadd.f32 %v1332, 1.0
        %v1461 = vadd.f32 %v1333, 1.0
        %v1462 = vadd.f32 %v1334, 1.0
        %v1463 = vadd.f32 %v1335, 1.0
        %v1464 = vadd.f32 %v1336, 1.0
        %v1465 = vadd.f32 %v1337, 1.0
        %v1466 = vadd.f32 %v1338, 1.0
        %v1467 = vadd.f32 %v1339, 1.0
        %v1468 = vadd.f32 %v1340, 1.0
        %v1469 = vadd.f32 %v1341, 1.0
        %v1470 = vadd.f32 %v1342, 1.0
        %v1471 = vadd.f32 %v1343, 1.0
        %v1472 = vadd.f32 %v1344, 1.0
        %v1473 = vadd.f32 %v1345, 1.0
        %v1474 = vadd.f32 %v1346, 1.0
        %v1475 = vadd.f32 %v1347, 1.0
        %v1476 = vadd.f32 %v1348, 1.0
        %v1477 = vadd.f32 %v1349, 1.0
        %v1478 = vadd.f32 %v1350, 1.0
        %v1479 = vadd.f32 %v1351, 1.0
        %v1480 = vadd.f32 %v1352, 1.0
        %v1481 = vadd.f32 %v1353, 1.0
        %v1482 = vadd.f32 %v1354, 1.0
        %v1483 = vadd.f32 %v1355, 1.0
        %v1484 = vadd.f32 %v1356, 1.0
        %v1485 = vadd.f32 %v1357, 1.0
        %v1486 = vadd.f32 %v1358, 1.0
        %v1487 = vadd.f32 %v1359, 1.0
        %v1488 = vadd.f32 %v1360, 1.0
        %v1489 = vadd.f32 %v1361, 1.0
        %v1490 = vadd.f32 %v1362, 1.0
        %v1491 = vadd.f32 %v1363, 1.0
        %v1492 = vadd.f32 %v1364, 1.0
        %v1493 = vadd.f32 %v1365, 1.0
        %v1494 = vadd.f32 %v1366, 1.0
        %v1495 = vadd.f32 %v1367, 1.0
        %v1496 = vadd.f32 %v1368, 1.0
        %v1497 = vadd.f32 %v1369, 1.0
        %v1498 = vadd.f32 %v1370, 1.0
        %v1499 = vadd.f32 %v1371, 1.0
        %v1500 = vadd.f32 %v1372, 1.0
        %v1501 = vadd.f32 %v1373, 1.0
        %v1502 = vadd.f32 %v1374, 1.0
        %v1503 = vmul.f32 %v991, %v1375
        %v1504 = vmul.f32 %v992, %v1376
        %v1505 = vmul.f32 %v993, %v1377
        %v1506 = vmul.f32 %v994, %v1378
        %v1507 = vmul.f32 %v995, %v1379
        %v1508 = vmul.f32 %v996, %v1380
        %v1509 = vmul.f32 %v997, %v1381
        %v1510 = vmul.f32 %v998, %v1382
        %v1511 = vmul.f32 %v999, %v1383
        %v1512 = vmul.f32 %v1000, %v1384
        %v1513 = vmul.f32 %v1001, %v1385
        %v1514 = vmul.f32 %v1002, %v1386
        %v1515 = vmul.f32 %v1003, %v1387
        %v1516 = vmul.f32 %v1004, %v1388
        %v1517 = vmul.f32 %v1005, %v1389
        %v1518 = vmul.f32 %v1006, %v1390
        %v1519 = vmul.f32 %v1007, %v1391
        %v1520 = vmul.f32 %v1008, %v1392
        %v1521 = vmul.f32 %v1009, %v1393
        %v1522 = vmul.f32 %v1010, %v1394
        %v1523 = vmul.f32 %v1011, %v1395
        %v1524 = vmul.f32 %v1012, %v1396
        %v1525 = vmul.f32 %v1013, %v1397
        %v1526 = vmul.f32 %v1014, %v1398
        %v1527 = vmul.f32 %v1015, %v1399
        %v1528 = vmul.f32 %v1016, %v1400
        %v1529 = vmul.f32 %v1017, %v1401
        %v1530 = vmul.f32 %v1018, %v1402
        %v1531 = vmul.f32 %v1019, %v1403
        %v1532 = vmul.f32 %v1020, %v1404
        %v1533 = vmul.f32 %v1021, %v1405
        %v1534 = vmul.f32 %v1022, %v1406
        %v1535 = vmul.f32 %v1023, %v1407
        %v1536 = vmul.f32 %v1024, %v1408
        %v1537 = vmul.f32 %v1025, %v1409
        %v1538 = vmul.f32 %v1026, %v1410
        %v1539 = vmul.f32 %v1027, %v1411
        %v1540 = vmul.f32 %v1028, %v1412
        %v1541 = vmul.f32 %v1029, %v1413
        %v1542 = vmul.f32 %v1030, %v1414
        %v1543 = vmul.f32 %v1031, %v1415
        %v1544 = vmul.f32 %v1032, %v1416
        %v1545 = vmul.f32 %v1033, %v1417
        %v1546 = vmul.f32 %v1034, %v1418
        %v1547 = vmul.f32 %v1035, %v1419
        %v1548 = vmul.f32 %v1036, %v1420
        %v1549 = vmul.f32 %v1037, %v1421
        %v1550 = vmul.f32 %v1038, %v1422
        %v1551 = vmul.f32 %v1039, %v1423
        %v1552 = vmul.f32 %v1040, %v1424
        %v1553 = vmul.f32 %v1041, %v1425
        %v1554 = vmul.f32 %v1042, %v1426
        %v1555 = vmul.f32 %v1043, %v1427
        %v1556 = vmul.f32 %v1044, %v1428
        %v1557 = vmul.f32 %v1045, %v1429
        %v1558 = vmul.f32 %v1046, %v1430
        %v1559 = vmul.f32 %v1047, %v1431
        %v1560 = vmul.f32 %v1048, %v1432
        %v1561 = vmul.f32 %v1049, %v1433
        %v1562 = vmul.f32 %v1050, %v1434
        %v1563 = vmul.f32 %v1051, %v1435
        %v1564 = vmul.f32 %v1052, %v1436
        %v1565 = vmul.f32 %v1053, %v1437
        %v1566 = vmul.f32 %v1054, %v1438
        %v1567 = vmul.f32 %v1055, %v1439
        %v1568 = vmul.f32 %v1056, %v1440
        %v1569 = vmul.f32 %v1057, %v1441
        %v1570 = vmul.f32 %v1058, %v1442
        %v1571 = vmul.f32 %v1059, %v1443
        %v1572 = vmul.f32 %v1060, %v1444
        %v1573 = vmul.f32 %v1061, %v1445
        %v1574 = vmul.f32 %v1062, %v1446
        %v1575 = vmul.f32 %v1063, %v1447
        %v1576 = vmul.f32 %v1064, %v1448
        %v1577 = vmul.f32 %v1065, %v1449
        %v1578 = vmul.f32 %v1066, %v1450
        %v1579 = vmul.f32 %v1067, %v1451
        %v1580 = vmul.f32 %v1068, %v1452
        %v1581 = vmul.f32 %v1069, %v1453
        %v1582 = vmul.f32 %v1070, %v1454
        %v1583 = vmul.f32 %v1071, %v1455
        %v1584 = vmul.f32 %v1072, %v1456
        %v1585 = vmul.f32 %v1073, %v1457
        %v1586 = vmul.f32 %v1074, %v1458
        %v1587 = vmul.f32 %v1075, %v1459
        %v1588 = vmul.f32 %v1076, %v1460
        %v1589 = vmul.f32 %v1077, %v1461
        %v1590 = vmul.f32 %v1078, %v1462
        %v1591 = vmul.f32 %v1079, %v1463
        %v1592 = vmul.f32 %v1080, %v1464
        %v1593 = vmul.f32 %v1081, %v1465
        %v1594 = vmul.f32 %v1082, %v1466
        %v1595 = vmul.f32 %v1083, %v1467
        %v1596 = vmul.f32 %v1084, %v1468
        %v1597 = vmul.f32 %v1085, %v1469
        %v1598 = vmul.f32 %v1086, %v1470
        %v1599 = vmul.f32 %v1087, %v1471
        %v1600 = vmul.f32 %v1088, %v1472
        %v1601 = vmul.f32 %v1089, %v1473
        %v1602 = vmul.f32 %v1090, %v1474
        %v1603 = vmul.f32 %v1091, %v1475
        %v1604 = vmul.f32 %v1092, %v1476
        %v1605 = vmul.f32 %v1093, %v1477
        %v1606 = vmul.f32 %v1094, %v1478
        %v1607 = vmul.f32 %v1095, %v1479
        %v1608 = vmul.f32 %v1096, %v1480
        %v1609 = vmul.f32 %v1097, %v1481
        %v1610 = vmul.f32 %v1098, %v1482
        %v1611 = vmul.f32 %v1099, %v1483
        %v1612 = vmul.f32 %v1100, %v1484
        %v1613 = vmul.f32 %v1101, %v1485
        %v1614 = vmul.f32 %v1102, %v1486
        %v1615 = vmul.f32 %v1103, %v1487
        %v1616 = vmul.f32 %v1104, %v1488
        %v1617 = vmul.f32 %v1105, %v1489
        %v1618 = vmul.f32 %v1106, %v1490
        %v1619 = vmul.f32 %v1107, %v1491
        %v1620 = vmul.f32 %v1108, %v1492
        %v1621 = vmul.f32 %v1109, %v1493
        %v1622 = vmul.f32 %v1110, %v1494
        %v1623 = vmul.f32 %v1111, %v1495
        %v1624 = vmul.f32 %v1112, %v1496
        %v1625 = vmul.f32 %v1113, %v1497
        %v1626 = vmul.f32 %v1114, %v1498
        %v1627 = vmul.f32 %v1115, %v1499
        %v1628 = vmul.f32 %v1116, %v1500
        %v1629 = vmul.f32 %v1117, %v1501
        %v1630 = vmul.f32 %v1118, %v1502
        %v1631 = vld [vmem:[#allocation2] sm:$0xff]
        %v1632 = vld [vmem:[#allocation2 + $0x8] sm:$0xff]
        %v1633 = vld [vmem:[#allocation2 + $0x10] sm:$0xff]
        %v1634 = vld [vmem:[#allocation2 + $0x18] sm:$0xff]
        %v1635 = vld [vmem:[#allocation2 + $0x20] sm:$0xff]
        %v1636 = vld [vmem:[#allocation2 + $0x28] sm:$0xff]
        %v1637 = vld [vmem:[#allocation2 + $0x30] sm:$0xff]
        %v1638 = vld [vmem:[#allocation2 + $0x38] sm:$0xff]
        %v1639 = vld [vmem:[#allocation2 + $0x40] sm:$0xff]
        %v1640 = vld [vmem:[#allocation2 + $0x48] sm:$0xff]
        %v1641 = vld [vmem:[#allocation2 + $0x50] sm:$0xff]
        %v1642 = vld [vmem:[#allocation2 + $0x58] sm:$0xff]
        %v1643 = vld [vmem:[#allocation2 + $0x60] sm:$0xff]
        %v1644 = vld [vmem:[#allocation2 + $0x68] sm:$0xff]
        %v1645 = vld [vmem:[#allocation2 + $0x70] sm:$0xff]
        %v1646 = vld [vmem:[#allocation2 + $0x78] sm:$0xff]
        %v1647 = vld [vmem:[#allocation2 + $0x80] sm:$0xff]
        %v1648 = vld [vmem:[#allocation2 + $0x88] sm:$0xff]
        %v1649 = vld [vmem:[#allocation2 + $0x90] sm:$0xff]
        %v1650 = vld [vmem:[#allocation2 + $0x98] sm:$0xff]
        %v1651 = vld [vmem:[#allocation2 + $0xa0] sm:$0xff]
        %v1652 = vld [vmem:[#allocation2 + $0xa8] sm:$0xff]
        %v1653 = vld [vmem:[#allocation2 + $0xb0] sm:$0xff]
        %v1654 = vld [vmem:[#allocation2 + $0xb8] sm:$0xff]
        %v1655 = vld [vmem:[#allocation2 + $0xc0] sm:$0xff]
        %v1656 = vld [vmem:[#allocation2 + $0xc8] sm:$0xff]
        %v1657 = vld [vmem:[#allocation2 + $0xd0] sm:$0xff]
        %v1658 = vld [vmem:[#allocation2 + $0xd8] sm:$0xff]
        %v1659 = vld [vmem:[#allocation2 + $0xe0] sm:$0xff]
        %v1660 = vld [vmem:[#allocation2 + $0xe8] sm:$0xff]
        %v1661 = vld [vmem:[#allocation2 + $0xf0] sm:$0xff]
        %v1662 = vld [vmem:[#allocation2 + $0xf8] sm:$0xff]
        %v1663 = vld [vmem:[#allocation8] sm:$0xff]
        %v1664 = vld [vmem:[#allocation8 + $0x8] sm:$0xff]
        %v1665 = vld [vmem:[#allocation8 + $0x10] sm:$0xff]
        %v1666 = vld [vmem:[#allocation8 + $0x18] sm:$0xff]
        %v1667 = vld [vmem:[#allocation8 + $0x20] sm:$0xff]
        %v1668 = vld [vmem:[#allocation8 + $0x28] sm:$0xff]
        %v1669 = vld [vmem:[#allocation8 + $0x30] sm:$0xff]
        %v1670 = vld [vmem:[#allocation8 + $0x38] sm:$0xff]
        %v1671 = vld [vmem:[#allocation8 + $0x40] sm:$0xff]
        %v1672 = vld [vmem:[#allocation8 + $0x48] sm:$0xff]
        %v1673 = vld [vmem:[#allocation8 + $0x50] sm:$0xff]
        %v1674 = vld [vmem:[#allocation8 + $0x58] sm:$0xff]
        %v1675 = vld [vmem:[#allocation8 + $0x60] sm:$0xff]
        %v1676 = vld [vmem:[#allocation8 + $0x68] sm:$0xff]
        %v1677 = vld [vmem:[#allocation8 + $0x70] sm:$0xff]
        %v1678 = vld [vmem:[#allocation8 + $0x78] sm:$0xff]
        %v1679 = vld [vmem:[#allocation8 + $0x80] sm:$0xff]
        %v1680 = vld [vmem:[#allocation8 + $0x88] sm:$0xff]
        %v1681 = vld [vmem:[#allocation8 + $0x90] sm:$0xff]
        %v1682 = vld [vmem:[#allocation8 + $0x98] sm:$0xff]
        %v1683 = vld [vmem:[#allocation8 + $0xa0] sm:$0xff]
        %v1684 = vld [vmem:[#allocation8 + $0xa8] sm:$0xff]
        %v1685 = vld [vmem:[#allocation8 + $0xb0] sm:$0xff]
        %v1686 = vld [vmem:[#allocation8 + $0xb8] sm:$0xff]
        %v1687 = vld [vmem:[#allocation8 + $0xc0] sm:$0xff]
        %v1688 = vld [vmem:[#allocation8 + $0xc8] sm:$0xff]
        %v1689 = vld [vmem:[#allocation8 + $0xd0] sm:$0xff]
        %v1690 = vld [vmem:[#allocation8 + $0xd8] sm:$0xff]
        %v1691 = vld [vmem:[#allocation8 + $0xe0] sm:$0xff]
        %v1692 = vld [vmem:[#allocation8 + $0xe8] sm:$0xff]
        %v1693 = vld [vmem:[#allocation8 + $0xf0] sm:$0xff]
        %v1694 = vld [vmem:[#allocation8 + $0xf8] sm:$0xff]
        %v1695 = vld [vmem:[#allocation8 + $0x100] sm:$0xff]
        %v1696 = vld [vmem:[#allocation8 + $0x108] sm:$0xff]
        %v1697 = vld [vmem:[#allocation8 + $0x110] sm:$0xff]
        %v1698 = vld [vmem:[#allocation8 + $0x118] sm:$0xff]
        %v1699 = vld [vmem:[#allocation8 + $0x120] sm:$0xff]
        %v1700 = vld [vmem:[#allocation8 + $0x128] sm:$0xff]
        %v1701 = vld [vmem:[#allocation8 + $0x130] sm:$0xff]
        %v1702 = vld [vmem:[#allocation8 + $0x138] sm:$0xff]
        %v1703 = vld [vmem:[#allocation8 + $0x140] sm:$0xff]
        %v1704 = vld [vmem:[#allocation8 + $0x148] sm:$0xff]
        %v1705 = vld [vmem:[#allocation8 + $0x150] sm:$0xff]
        %v1706 = vld [vmem:[#allocation8 + $0x158] sm:$0xff]
        %v1707 = vld [vmem:[#allocation8 + $0x160] sm:$0xff]
        %v1708 = vld [vmem:[#allocation8 + $0x168] sm:$0xff]
        %v1709 = vld [vmem:[#allocation8 + $0x170] sm:$0xff]
        %v1710 = vld [vmem:[#allocation8 + $0x178] sm:$0xff]
        %v1711 = vld [vmem:[#allocation8 + $0x180] sm:$0xff]
        %v1712 = vld [vmem:[#allocation8 + $0x188] sm:$0xff]
        %v1713 = vld [vmem:[#allocation8 + $0x190] sm:$0xff]
        %v1714 = vld [vmem:[#allocation8 + $0x198] sm:$0xff]
        %v1715 = vld [vmem:[#allocation8 + $0x1a0] sm:$0xff]
        %v1716 = vld [vmem:[#allocation8 + $0x1a8] sm:$0xff]
        %v1717 = vld [vmem:[#allocation8 + $0x1b0] sm:$0xff]
        %v1718 = vld [vmem:[#allocation8 + $0x1b8] sm:$0xff]
        %v1719 = vld [vmem:[#allocation8 + $0x1c0] sm:$0xff]
        %v1720 = vld [vmem:[#allocation8 + $0x1c8] sm:$0xff]
        %v1721 = vld [vmem:[#allocation8 + $0x1d0] sm:$0xff]
        %v1722 = vld [vmem:[#allocation8 + $0x1d8] sm:$0xff]
        %v1723 = vld [vmem:[#allocation8 + $0x1e0] sm:$0xff]
        %v1724 = vld [vmem:[#allocation8 + $0x1e8] sm:$0xff]
        %v1725 = vld [vmem:[#allocation8 + $0x1f0] sm:$0xff]
        %v1726 = vld [vmem:[#allocation8 + $0x1f8] sm:$0xff]
        %1727 = vmatprep.subr.mxu0 0.0
        %1728 = vmatpush1.msra.mxu0 %v1678
        %1729 = vmatprep.subr.mxu0 0.0
        %1730 = vmatpush1.msra.mxu0 %v1677
        %1731 = vmatprep.subr.mxu0 0.0
        %1732 = vmatpush1.msra.mxu0 %v1676
        %1733 = vmatprep.subr.mxu0 0.0
        %1734 = vmatpush1.msra.mxu0 %v1675
        %1735 = vmatprep.subr.mxu0 0.0
        %1736 = vmatpush1.msra.mxu0 %v1674
        %1737 = vmatprep.subr.mxu0 0.0
        %1738 = vmatpush1.msra.mxu0 %v1673
        %1739 = vmatprep.subr.mxu0 0.0
        %1740 = vmatpush1.msra.mxu0 %v1672
        %1741 = vmatprep.subr.mxu0 0.0
        %1742 = vmatpush1.msra.mxu0 %v1671
        %1743 = vmatprep.subr.mxu0 0.0
        %1744 = vmatpush1.msra.mxu0 %v1670
        %1745 = vmatprep.subr.mxu0 0.0
        %1746 = vmatpush1.msra.mxu0 %v1669
        %1747 = vmatprep.subr.mxu0 0.0
        %1748 = vmatpush1.msra.mxu0 %v1668
        %1749 = vmatprep.subr.mxu0 0.0
        %1750 = vmatpush1.msra.mxu0 %v1667
        %1751 = vmatprep.subr.mxu0 0.0
        %1752 = vmatpush1.msra.mxu0 %v1666
        %1753 = vmatprep.subr.mxu0 0.0
        %1754 = vmatpush1.msra.mxu0 %v1665
        %1755 = vmatprep.subr.mxu0 0.0
        %1756 = vmatpush1.msra.mxu0 %v1664
        %1757 = vmatprep.subr.mxu0 0.0
        %1758 = vmatpush1.msra.mxu0 %v1663
        %1759 = vmatprep.subr.mxu0 0.0
        %1760 = vmatpush2.msra.mxu0 %v1694
        %1761 = vmatprep.subr.mxu0 0.0
        %1762 = vmatpush2.msra.mxu0 %v1693
        %1763 = vmatprep.subr.mxu0 0.0
        %1764 = vmatpush2.msra.mxu0 %v1692
        %1765 = vmatprep.subr.mxu0 0.0
        %1766 = vmatpush2.msra.mxu0 %v1691
        %1767 = vmatprep.subr.mxu0 0.0
        %1768 = vmatpush2.msra.mxu0 %v1690
        %1769 = vmatprep.subr.mxu0 0.0
        %1770 = vmatpush2.msra.mxu0 %v1689
        %1771 = vmatprep.subr.mxu0 0.0
        %1772 = vmatpush2.msra.mxu0 %v1688
        %1773 = vmatprep.subr.mxu0 0.0
        %1774 = vmatpush2.msra.mxu0 %v1687
        %1775 = vmatprep.subr.mxu0 0.0
        %1776 = vmatpush2.msra.mxu0 %v1686
        %1777 = vmatprep.subr.mxu0 0.0
        %1778 = vmatpush2.msra.mxu0 %v1685
        %1779 = vmatprep.subr.mxu0 0.0
        %1780 = vmatpush2.msra.mxu0 %v1684
        %1781 = vmatprep.subr.mxu0 0.0
        %1782 = vmatpush2.msra.mxu0 %v1683
        %1783 = vmatprep.subr.mxu0 0.0
        %1784 = vmatpush2.msra.mxu0 %v1682
        %1785 = vmatprep.subr.mxu0 0.0
        %1786 = vmatpush2.msra.mxu0 %v1681
        %1787 = vmatprep.subr.mxu0 0.0
        %1788 = vmatpush2.msra.mxu0 %v1680
        %1789 = vmatprep.subr.mxu0 0.0
        %1790 = vmatpush2.msra.mxu0 %v1679
        %1791 = vmatprep.mubr.f32.mxu0 %v1504
        %1792 = vmatmul.mubr.f32.gmra.mxu0 %v1503
        %v1793 = vpop.f32.mrf.mxu0
        %v1794 = vadd.f32 0.0, %v1793
        %v1795 = vpop.f32.mrf.mxu0
        %1796 = vmatprep.mubr.f32.mxu0 %v1508
        %1797 = vmatmul.mubr.f32.gmra.mxu0 %v1507
        %v1798 = vpop.f32.mrf.mxu0
        %v1799 = vadd.f32 0.0, %v1798
        %v1800 = vpop.f32.mrf.mxu0
        %1801 = vmatprep.mubr.f32.mxu0 %v1512
        %1802 = vmatmul.mubr.f32.gmra.mxu0 %v1511
        %v1803 = vpop.f32.mrf.mxu0
        %v1804 = vadd.f32 0.0, %v1803
        %v1805 = vpop.f32.mrf.mxu0
        %1806 = vmatprep.mubr.f32.mxu0 %v1516
        %1807 = vmatmul.mubr.f32.gmra.mxu0 %v1515
        %v1808 = vpop.f32.mrf.mxu0
        %v1809 = vadd.f32 0.0, %v1808
        %v1810 = vpop.f32.mrf.mxu0
        %1811 = vmatprep.mubr.f32.mxu0 %v1520
        %1812 = vmatmul.mubr.f32.gmra.mxu0 %v1519
        %v1813 = vpop.f32.mrf.mxu0
        %v1814 = vadd.f32 0.0, %v1813
        %v1815 = vpop.f32.mrf.mxu0
        %1816 = vmatprep.mubr.f32.mxu0 %v1524
        %1817 = vmatmul.mubr.f32.gmra.mxu0 %v1523
        %v1818 = vpop.f32.mrf.mxu0
        %v1819 = vadd.f32 0.0, %v1818
        %v1820 = vpop.f32.mrf.mxu0
        %1821 = vmatprep.mubr.f32.mxu0 %v1528
        %1822 = vmatmul.mubr.f32.gmra.mxu0 %v1527
        %v1823 = vpop.f32.mrf.mxu0
        %v1824 = vadd.f32 0.0, %v1823
        %v1825 = vpop.f32.mrf.mxu0
        %1826 = vmatprep.mubr.f32.mxu0 %v1532
        %1827 = vmatmul.mubr.f32.gmra.mxu0 %v1531
        %v1828 = vpop.f32.mrf.mxu0
        %v1829 = vadd.f32 0.0, %v1828
        %v1830 = vpop.f32.mrf.mxu0
        %1831 = vmatprep.mubr.f32.mxu0 %v1536
        %1832 = vmatmul.mubr.f32.gmra.mxu0 %v1535
        %v1833 = vpop.f32.mrf.mxu0
        %v1834 = vadd.f32 0.0, %v1833
        %v1835 = vpop.f32.mrf.mxu0
        %1836 = vmatprep.mubr.f32.mxu0 %v1540
        %1837 = vmatmul.mubr.f32.gmra.mxu0 %v1539
        %v1838 = vpop.f32.mrf.mxu0
        %v1839 = vadd.f32 0.0, %v1838
        %v1840 = vpop.f32.mrf.mxu0
        %1841 = vmatprep.mubr.f32.mxu0 %v1544
        %1842 = vmatmul.mubr.f32.gmra.mxu0 %v1543
        %v1843 = vpop.f32.mrf.mxu0
        %v1844 = vadd.f32 0.0, %v1843
        %v1845 = vpop.f32.mrf.mxu0
        %1846 = vmatprep.mubr.f32.mxu0 %v1548
        %1847 = vmatmul.mubr.f32.gmra.mxu0 %v1547
        %v1848 = vpop.f32.mrf.mxu0
        %v1849 = vadd.f32 0.0, %v1848
        %v1850 = vpop.f32.mrf.mxu0
        %1851 = vmatprep.mubr.f32.mxu0 %v1552
        %1852 = vmatmul.mubr.f32.gmra.mxu0 %v1551
        %v1853 = vpop.f32.mrf.mxu0
        %v1854 = vadd.f32 0.0, %v1853
        %v1855 = vpop.f32.mrf.mxu0
        %1856 = vmatprep.mubr.f32.mxu0 %v1556
        %1857 = vmatmul.mubr.f32.gmra.mxu0 %v1555
        %v1858 = vpop.f32.mrf.mxu0
        %v1859 = vadd.f32 0.0, %v1858
        %v1860 = vpop.f32.mrf.mxu0
        %1861 = vmatprep.mubr.f32.mxu0 %v1560
        %1862 = vmatmul.mubr.f32.gmra.mxu0 %v1559
        %v1863 = vpop.f32.mrf.mxu0
        %v1864 = vadd.f32 0.0, %v1863
        %v1865 = vpop.f32.mrf.mxu0
        %1866 = vmatprep.mubr.f32.mxu0 %v1564
        %1867 = vmatmul.mubr.f32.gmra.mxu0 %v1563
        %v1868 = vpop.f32.mrf.mxu0
        %v1869 = vadd.f32 0.0, %v1868
        %v1870 = vpop.f32.mrf.mxu0
        %1871 = vmatprep.mubr.f32.mxu0 %v1568
        %1872 = vmatmul.mubr.f32.gmra.mxu0 %v1567
        %v1873 = vpop.f32.mrf.mxu0
        %v1874 = vadd.f32 0.0, %v1873
        %v1875 = vpop.f32.mrf.mxu0
        %1876 = vmatprep.mubr.f32.mxu0 %v1572
        %1877 = vmatmul.mubr.f32.gmra.mxu0 %v1571
        %v1878 = vpop.f32.mrf.mxu0
        %v1879 = vadd.f32 0.0, %v1878
        %v1880 = vpop.f32.mrf.mxu0
        %1881 = vmatprep.mubr.f32.mxu0 %v1576
        %1882 = vmatmul.mubr.f32.gmra.mxu0 %v1575
        %v1883 = vpop.f32.mrf.mxu0
        %v1884 = vadd.f32 0.0, %v1883
        %v1885 = vpop.f32.mrf.mxu0
        %1886 = vmatprep.mubr.f32.mxu0 %v1580
        %1887 = vmatmul.mubr.f32.gmra.mxu0 %v1579
        %v1888 = vpop.f32.mrf.mxu0
        %v1889 = vadd.f32 0.0, %v1888
        %v1890 = vpop.f32.mrf.mxu0
        %1891 = vmatprep.mubr.f32.mxu0 %v1584
        %1892 = vmatmul.mubr.f32.gmra.mxu0 %v1583
        %v1893 = vpop.f32.mrf.mxu0
        %v1894 = vadd.f32 0.0, %v1893
        %v1895 = vpop.f32.mrf.mxu0
        %1896 = vmatprep.mubr.f32.mxu0 %v1588
        %1897 = vmatmul.mubr.f32.gmra.mxu0 %v1587
        %v1898 = vpop.f32.mrf.mxu0
        %v1899 = vadd.f32 0.0, %v1898
        %v1900 = vpop.f32.mrf.mxu0
        %1901 = vmatprep.mubr.f32.mxu0 %v1592
        %1902 = vmatmul.mubr.f32.gmra.mxu0 %v1591
        %v1903 = vpop.f32.mrf.mxu0
        %v1904 = vadd.f32 0.0, %v1903
        %v1905 = vpop.f32.mrf.mxu0
        %1906 = vmatprep.mubr.f32.mxu0 %v1596
        %1907 = vmatmul.mubr.f32.gmra.mxu0 %v1595
        %v1908 = vpop.f32.mrf.mxu0
        %v1909 = vadd.f32 0.0, %v1908
        %v1910 = vpop.f32.mrf.mxu0
        %1911 = vmatprep.mubr.f32.mxu0 %v1600
        %1912 = vmatmul.mubr.f32.gmra.mxu0 %v1599
        %v1913 = vpop.f32.mrf.mxu0
        %v1914 = vadd.f32 0.0, %v1913
        %v1915 = vpop.f32.mrf.mxu0
        %1916 = vmatprep.mubr.f32.mxu0 %v1604
        %1917 = vmatmul.mubr.f32.gmra.mxu0 %v1603
        %v1918 = vpop.f32.mrf.mxu0
        %v1919 = vadd.f32 0.0, %v1918
        %v1920 = vpop.f32.mrf.mxu0
        %1921 = vmatprep.mubr.f32.mxu0 %v1608
        %1922 = vmatmul.mubr.f32.gmra.mxu0 %v1607
        %v1923 = vpop.f32.mrf.mxu0
        %v1924 = vadd.f32 0.0, %v1923
        %v1925 = vpop.f32.mrf.mxu0
        %1926 = vmatprep.mubr.f32.mxu0 %v1612
        %1927 = vmatmul.mubr.f32.gmra.mxu0 %v1611
        %v1928 = vpop.f32.mrf.mxu0
        %v1929 = vadd.f32 0.0, %v1928
        %v1930 = vpop.f32.mrf.mxu0
        %1931 = vmatprep.mubr.f32.mxu0 %v1616
        %1932 = vmatmul.mubr.f32.gmra.mxu0 %v1615
        %v1933 = vpop.f32.mrf.mxu0
        %v1934 = vadd.f32 0.0, %v1933
        %v1935 = vpop.f32.mrf.mxu0
        %1936 = vmatprep.mubr.f32.mxu0 %v1620
        %1937 = vmatmul.mubr.f32.gmra.mxu0 %v1619
        %v1938 = vpop.f32.mrf.mxu0
        %v1939 = vadd.f32 0.0, %v1938
        %v1940 = vpop.f32.mrf.mxu0
        %1941 = vmatprep.mubr.f32.mxu0 %v1624
        %1942 = vmatmul.mubr.f32.gmra.mxu0 %v1623
        %v1943 = vpop.f32.mrf.mxu0
        %v1944 = vadd.f32 0.0, %v1943
        %v1945 = vpop.f32.mrf.mxu0
        %1946 = vmatprep.mubr.f32.mxu0 %v1628
        %1947 = vmatmul.mubr.f32.gmra.mxu0 %v1627
        %v1948 = vpop.f32.mrf.mxu0
        %v1949 = vadd.f32 0.0, %v1948
        %v1950 = vpop.f32.mrf.mxu0
        %1951 = vdwg.mxu0
        %1952 = vmatprep.subr.mxu0 0.0
        %1953 = vmatpush1.msra.mxu0 %v1710
        %1954 = vmatprep.subr.mxu0 0.0
        %1955 = vmatpush1.msra.mxu0 %v1709
        %1956 = vmatprep.subr.mxu0 0.0
        %1957 = vmatpush1.msra.mxu0 %v1708
        %1958 = vmatprep.subr.mxu0 0.0
        %1959 = vmatpush1.msra.mxu0 %v1707
        %1960 = vmatprep.subr.mxu0 0.0
        %1961 = vmatpush1.msra.mxu0 %v1706
        %1962 = vmatprep.subr.mxu0 0.0
        %1963 = vmatpush1.msra.mxu0 %v1705
        %1964 = vmatprep.subr.mxu0 0.0
        %1965 = vmatpush1.msra.mxu0 %v1704
        %1966 = vmatprep.subr.mxu0 0.0
        %1967 = vmatpush1.msra.mxu0 %v1703
        %1968 = vmatprep.subr.mxu0 0.0
        %1969 = vmatpush1.msra.mxu0 %v1702
        %1970 = vmatprep.subr.mxu0 0.0
        %1971 = vmatpush1.msra.mxu0 %v1701
        %1972 = vmatprep.subr.mxu0 0.0
        %1973 = vmatpush1.msra.mxu0 %v1700
        %1974 = vmatprep.subr.mxu0 0.0
        %1975 = vmatpush1.msra.mxu0 %v1699
        %1976 = vmatprep.subr.mxu0 0.0
        %1977 = vmatpush1.msra.mxu0 %v1698
        %1978 = vmatprep.subr.mxu0 0.0
        %1979 = vmatpush1.msra.mxu0 %v1697
        %1980 = vmatprep.subr.mxu0 0.0
        %1981 = vmatpush1.msra.mxu0 %v1696
        %1982 = vmatprep.subr.mxu0 0.0
        %1983 = vmatpush1.msra.mxu0 %v1695
        %1984 = vmatprep.subr.mxu0 0.0
        %1985 = vmatpush2.msra.mxu0 %v1726
        %1986 = vmatprep.subr.mxu0 0.0
        %1987 = vmatpush2.msra.mxu0 %v1725
        %1988 = vmatprep.subr.mxu0 0.0
        %1989 = vmatpush2.msra.mxu0 %v1724
        %1990 = vmatprep.subr.mxu0 0.0
        %1991 = vmatpush2.msra.mxu0 %v1723
        %1992 = vmatprep.subr.mxu0 0.0
        %1993 = vmatpush2.msra.mxu0 %v1722
        %1994 = vmatprep.subr.mxu0 0.0
        %1995 = vmatpush2.msra.mxu0 %v1721
        %1996 = vmatprep.subr.mxu0 0.0
        %1997 = vmatpush2.msra.mxu0 %v1720
        %1998 = vmatprep.subr.mxu0 0.0
        %1999 = vmatpush2.msra.mxu0 %v1719
        %2000 = vmatprep.subr.mxu0 0.0
        %2001 = vmatpush2.msra.mxu0 %v1718
        %2002 = vmatprep.subr.mxu0 0.0
        %2003 = vmatpush2.msra.mxu0 %v1717
        %2004 = vmatprep.subr.mxu0 0.0
        %2005 = vmatpush2.msra.mxu0 %v1716
        %2006 = vmatprep.subr.mxu0 0.0
        %2007 = vmatpush2.msra.mxu0 %v1715
        %2008 = vmatprep.subr.mxu0 0.0
        %2009 = vmatpush2.msra.mxu0 %v1714
        %2010 = vmatprep.subr.mxu0 0.0
        %2011 = vmatpush2.msra.mxu0 %v1713
        %2012 = vmatprep.subr.mxu0 0.0
        %2013 = vmatpush2.msra.mxu0 %v1712
        %2014 = vmatprep.subr.mxu0 0.0
        %2015 = vmatpush2.msra.mxu0 %v1711
        %2016 = vmatprep.mubr.f32.mxu0 %v1506
        %2017 = vmatmul.mubr.f32.gmra.mxu0 %v1505
        %v2018 = vpop.f32.mrf.mxu0
        %v2019 = vadd.f32 %v1794, %v2018
        %v2020 = vpop.f32.mrf.mxu0
        %2021 = vmatprep.mubr.f32.mxu0 %v1510
        %2022 = vmatmul.mubr.f32.gmra.mxu0 %v1509
        %v2023 = vpop.f32.mrf.mxu0
        %v2024 = vadd.f32 %v1799, %v2023
        %v2025 = vpop.f32.mrf.mxu0
        %2026 = vmatprep.mubr.f32.mxu0 %v1514
        %2027 = vmatmul.mubr.f32.gmra.mxu0 %v1513
        %v2028 = vpop.f32.mrf.mxu0
        %v2029 = vadd.f32 %v1804, %v2028
        %v2030 = vpop.f32.mrf.mxu0
        %2031 = vmatprep.mubr.f32.mxu0 %v1518
        %2032 = vmatmul.mubr.f32.gmra.mxu0 %v1517
        %v2033 = vpop.f32.mrf.mxu0
        %v2034 = vadd.f32 %v1809, %v2033
        %v2035 = vpop.f32.mrf.mxu0
        %2036 = vmatprep.mubr.f32.mxu0 %v1522
        %2037 = vmatmul.mubr.f32.gmra.mxu0 %v1521
        %v2038 = vpop.f32.mrf.mxu0
        %v2039 = vadd.f32 %v1814, %v2038
        %v2040 = vpop.f32.mrf.mxu0
        %2041 = vmatprep.mubr.f32.mxu0 %v1526
        %2042 = vmatmul.mubr.f32.gmra.mxu0 %v1525
        %v2043 = vpop.f32.mrf.mxu0
        %v2044 = vadd.f32 %v1819, %v2043
        %v2045 = vpop.f32.mrf.mxu0
        %2046 = vmatprep.mubr.f32.mxu0 %v1530
        %2047 = vmatmul.mubr.f32.gmra.mxu0 %v1529
        %v2048 = vpop.f32.mrf.mxu0
        %v2049 = vadd.f32 %v1824, %v2048
        %v2050 = vpop.f32.mrf.mxu0
        %2051 = vmatprep.mubr.f32.mxu0 %v1534
        %2052 = vmatmul.mubr.f32.gmra.mxu0 %v1533
        %v2053 = vpop.f32.mrf.mxu0
        %v2054 = vadd.f32 %v1829, %v2053
        %v2055 = vpop.f32.mrf.mxu0
        %2056 = vmatprep.mubr.f32.mxu0 %v1538
        %2057 = vmatmul.mubr.f32.gmra.mxu0 %v1537
        %v2058 = vpop.f32.mrf.mxu0
        %v2059 = vadd.f32 %v1834, %v2058
        %v2060 = vpop.f32.mrf.mxu0
        %2061 = vmatprep.mubr.f32.mxu0 %v1542
        %2062 = vmatmul.mubr.f32.gmra.mxu0 %v1541
        %v2063 = vpop.f32.mrf.mxu0
        %v2064 = vadd.f32 %v1839, %v2063
        %v2065 = vpop.f32.mrf.mxu0
        %2066 = vmatprep.mubr.f32.mxu0 %v1546
        %2067 = vmatmul.mubr.f32.gmra.mxu0 %v1545
        %v2068 = vpop.f32.mrf.mxu0
        %v2069 = vadd.f32 %v1844, %v2068
        %v2070 = vpop.f32.mrf.mxu0
        %2071 = vmatprep.mubr.f32.mxu0 %v1550
        %2072 = vmatmul.mubr.f32.gmra.mxu0 %v1549
        %v2073 = vpop.f32.mrf.mxu0
        %v2074 = vadd.f32 %v1849, %v2073
        %v2075 = vpop.f32.mrf.mxu0
        %2076 = vmatprep.mubr.f32.mxu0 %v1554
        %2077 = vmatmul.mubr.f32.gmra.mxu0 %v1553
        %v2078 = vpop.f32.mrf.mxu0
        %v2079 = vadd.f32 %v1854, %v2078
        %v2080 = vpop.f32.mrf.mxu0
        %2081 = vmatprep.mubr.f32.mxu0 %v1558
        %2082 = vmatmul.mubr.f32.gmra.mxu0 %v1557
        %v2083 = vpop.f32.mrf.mxu0
        %v2084 = vadd.f32 %v1859, %v2083
        %v2085 = vpop.f32.mrf.mxu0
        %2086 = vmatprep.mubr.f32.mxu0 %v1562
        %2087 = vmatmul.mubr.f32.gmra.mxu0 %v1561
        %v2088 = vpop.f32.mrf.mxu0
        %v2089 = vadd.f32 %v1864, %v2088
        %v2090 = vpop.f32.mrf.mxu0
        %2091 = vmatprep.mubr.f32.mxu0 %v1566
        %2092 = vmatmul.mubr.f32.gmra.mxu0 %v1565
        %v2093 = vpop.f32.mrf.mxu0
        %v2094 = vadd.f32 %v1869, %v2093
        %v2095 = vpop.f32.mrf.mxu0
        %2096 = vmatprep.mubr.f32.mxu0 %v1570
        %2097 = vmatmul.mubr.f32.gmra.mxu0 %v1569
        %v2098 = vpop.f32.mrf.mxu0
        %v2099 = vadd.f32 %v1874, %v2098
        %v2100 = vpop.f32.mrf.mxu0
        %2101 = vmatprep.mubr.f32.mxu0 %v1574
        %2102 = vmatmul.mubr.f32.gmra.mxu0 %v1573
        %v2103 = vpop.f32.mrf.mxu0
        %v2104 = vadd.f32 %v1879, %v2103
        %v2105 = vpop.f32.mrf.mxu0
        %2106 = vmatprep.mubr.f32.mxu0 %v1578
        %2107 = vmatmul.mubr.f32.gmra.mxu0 %v1577
        %v2108 = vpop.f32.mrf.mxu0
        %v2109 = vadd.f32 %v1884, %v2108
        %v2110 = vpop.f32.mrf.mxu0
        %2111 = vmatprep.mubr.f32.mxu0 %v1582
        %2112 = vmatmul.mubr.f32.gmra.mxu0 %v1581
        %v2113 = vpop.f32.mrf.mxu0
        %v2114 = vadd.f32 %v1889, %v2113
        %v2115 = vpop.f32.mrf.mxu0
        %2116 = vmatprep.mubr.f32.mxu0 %v1586
        %2117 = vmatmul.mubr.f32.gmra.mxu0 %v1585
        %v2118 = vpop.f32.mrf.mxu0
        %v2119 = vadd.f32 %v1894, %v2118
        %v2120 = vpop.f32.mrf.mxu0
        %2121 = vmatprep.mubr.f32.mxu0 %v1590
        %2122 = vmatmul.mubr.f32.gmra.mxu0 %v1589
        %v2123 = vpop.f32.mrf.mxu0
        %v2124 = vadd.f32 %v1899, %v2123
        %v2125 = vpop.f32.mrf.mxu0
        %2126 = vmatprep.mubr.f32.mxu0 %v1594
        %2127 = vmatmul.mubr.f32.gmra.mxu0 %v1593
        %v2128 = vpop.f32.mrf.mxu0
        %v2129 = vadd.f32 %v1904, %v2128
        %v2130 = vpop.f32.mrf.mxu0
        %2131 = vmatprep.mubr.f32.mxu0 %v1598
        %2132 = vmatmul.mubr.f32.gmra.mxu0 %v1597
        %v2133 = vpop.f32.mrf.mxu0
        %v2134 = vadd.f32 %v1909, %v2133
        %v2135 = vpop.f32.mrf.mxu0
        %2136 = vmatprep.mubr.f32.mxu0 %v1602
        %2137 = vmatmul.mubr.f32.gmra.mxu0 %v1601
        %v2138 = vpop.f32.mrf.mxu0
        %v2139 = vadd.f32 %v1914, %v2138
        %v2140 = vpop.f32.mrf.mxu0
        %2141 = vmatprep.mubr.f32.mxu0 %v1606
        %2142 = vmatmul.mubr.f32.gmra.mxu0 %v1605
        %v2143 = vpop.f32.mrf.mxu0
        %v2144 = vadd.f32 %v1919, %v2143
        %v2145 = vpop.f32.mrf.mxu0
        %2146 = vmatprep.mubr.f32.mxu0 %v1610
        %2147 = vmatmul.mubr.f32.gmra.mxu0 %v1609
        %v2148 = vpop.f32.mrf.mxu0
        %v2149 = vadd.f32 %v1924, %v2148
        %v2150 = vpop.f32.mrf.mxu0
        %2151 = vmatprep.mubr.f32.mxu0 %v1614
        %2152 = vmatmul.mubr.f32.gmra.mxu0 %v1613
        %v2153 = vpop.f32.mrf.mxu0
        %v2154 = vadd.f32 %v1929, %v2153
        %v2155 = vpop.f32.mrf.mxu0
        %2156 = vmatprep.mubr.f32.mxu0 %v1618
        %2157 = vmatmul.mubr.f32.gmra.mxu0 %v1617
        %v2158 = vpop.f32.mrf.mxu0
        %v2159 = vadd.f32 %v1934, %v2158
        %v2160 = vpop.f32.mrf.mxu0
        %2161 = vmatprep.mubr.f32.mxu0 %v1622
        %2162 = vmatmul.mubr.f32.gmra.mxu0 %v1621
        %v2163 = vpop.f32.mrf.mxu0
        %v2164 = vadd.f32 %v1939, %v2163
        %v2165 = vpop.f32.mrf.mxu0
        %2166 = vmatprep.mubr.f32.mxu0 %v1626
        %2167 = vmatmul.mubr.f32.gmra.mxu0 %v1625
        %v2168 = vpop.f32.mrf.mxu0
        %v2169 = vadd.f32 %v1944, %v2168
        %v2170 = vpop.f32.mrf.mxu0
        %2171 = vmatprep.mubr.f32.mxu0 %v1630
        %2172 = vmatmul.mubr.f32.gmra.mxu0 %v1629
        %v2173 = vpop.f32.mrf.mxu0
        %v2174 = vadd.f32 %v1949, %v2173
        %v2175 = vpop.f32.mrf.mxu0
        %2176 = vdwg.mxu0
        %v2177 = vadd.f32 %v1631, %v2019
        %v2178 = vadd.f32 %v1632, %v2024
        %v2179 = vadd.f32 %v1633, %v2029
        %v2180 = vadd.f32 %v1634, %v2034
        %v2181 = vadd.f32 %v1635, %v2039
        %v2182 = vadd.f32 %v1636, %v2044
        %v2183 = vadd.f32 %v1637, %v2049
        %v2184 = vadd.f32 %v1638, %v2054
        %v2185 = vadd.f32 %v1639, %v2059
        %v2186 = vadd.f32 %v1640, %v2064
        %v2187 = vadd.f32 %v1641, %v2069
        %v2188 = vadd.f32 %v1642, %v2074
        %v2189 = vadd.f32 %v1643, %v2079
        %v2190 = vadd.f32 %v1644, %v2084
        %v2191 = vadd.f32 %v1645, %v2089
        %v2192 = vadd.f32 %v1646, %v2094
        %v2193 = vadd.f32 %v1647, %v2099
        %v2194 = vadd.f32 %v1648, %v2104
        %v2195 = vadd.f32 %v1649, %v2109
        %v2196 = vadd.f32 %v1650, %v2114
        %v2197 = vadd.f32 %v1651, %v2119
        %v2198 = vadd.f32 %v1652, %v2124
        %v2199 = vadd.f32 %v1653, %v2129
        %v2200 = vadd.f32 %v1654, %v2134
        %v2201 = vadd.f32 %v1655, %v2139
        %v2202 = vadd.f32 %v1656, %v2144
        %v2203 = vadd.f32 %v1657, %v2149
        %v2204 = vadd.f32 %v1658, %v2154
        %v2205 = vadd.f32 %v1659, %v2159
        %v2206 = vadd.f32 %v1660, %v2164
        %v2207 = vadd.f32 %v1661, %v2169
        %v2208 = vadd.f32 %v1662, %v2174
        %2209 = vst [vmem:[#allocation2] sm:$0xff] %v2177
        %2210 = vst [vmem:[#allocation2 + $0x8] sm:$0xff] %v2178
        %2211 = vst [vmem:[#allocation2 + $0x10] sm:$0xff] %v2179
        %2212 = vst [vmem:[#allocation2 + $0x18] sm:$0xff] %v2180
        %2213 = vst [vmem:[#allocation2 + $0x20] sm:$0xff] %v2181
        %2214 = vst [vmem:[#allocation2 + $0x28] sm:$0xff] %v2182
        %2215 = vst [vmem:[#allocation2 + $0x30] sm:$0xff] %v2183
        %2216 = vst [vmem:[#allocation2 + $0x38] sm:$0xff] %v2184
        %2217 = vst [vmem:[#allocation2 + $0x40] sm:$0xff] %v2185
        %2218 = vst [vmem:[#allocation2 + $0x48] sm:$0xff] %v2186
        %2219 = vst [vmem:[#allocation2 + $0x50] sm:$0xff] %v2187
        %2220 = vst [vmem:[#allocation2 + $0x58] sm:$0xff] %v2188
        %2221 = vst [vmem:[#allocation2 + $0x60] sm:$0xff] %v2189
        %2222 = vst [vmem:[#allocation2 + $0x68] sm:$0xff] %v2190
        %2223 = vst [vmem:[#allocation2 + $0x70] sm:$0xff] %v2191
        %2224 = vst [vmem:[#allocation2 + $0x78] sm:$0xff] %v2192
        %2225 = vst [vmem:[#allocation2 + $0x80] sm:$0xff] %v2193
        %2226 = vst [vmem:[#allocation2 + $0x88] sm:$0xff] %v2194
        %2227 = vst [vmem:[#allocation2 + $0x90] sm:$0xff] %v2195
        %2228 = vst [vmem:[#allocation2 + $0x98] sm:$0xff] %v2196
        %2229 = vst [vmem:[#allocation2 + $0xa0] sm:$0xff] %v2197
        %2230 = vst [vmem:[#allocation2 + $0xa8] sm:$0xff] %v2198
        %2231 = vst [vmem:[#allocation2 + $0xb0] sm:$0xff] %v2199
        %2232 = vst [vmem:[#allocation2 + $0xb8] sm:$0xff] %v2200
        %2233 = vst [vmem:[#allocation2 + $0xc0] sm:$0xff] %v2201
        %2234 = vst [vmem:[#allocation2 + $0xc8] sm:$0xff] %v2202
        %2235 = vst [vmem:[#allocation2 + $0xd0] sm:$0xff] %v2203
        %2236 = vst [vmem:[#allocation2 + $0xd8] sm:$0xff] %v2204
        %2237 = vst [vmem:[#allocation2 + $0xe0] sm:$0xff] %v2205
        %2238 = vst [vmem:[#allocation2 + $0xe8] sm:$0xff] %v2206
        %2239 = vst [vmem:[#allocation2 + $0xf0] sm:$0xff] %v2207
        %2240 = vst [vmem:[#allocation2 + $0xf8] sm:$0xff] %v2208
        // Predicated region
        $region57: #{mlp_pallas.1} parent=39 // pred_check
          %p2241 = pneg %p323
        $region58: #{mlp_pallas.1} parent=39 // pred_check_branch
          %2243 = sbr.rel (%p2241) target = $region60
        $region59: #{mlp_pallas.1} parent=39 // pred_region
          %v2244 = vld [vmem:[#allocation2] sm:$0xff]
          %v2245 = vld [vmem:[#allocation2 + $0x8] sm:$0xff]
          %v2246 = vld [vmem:[#allocation2 + $0x10] sm:$0xff]
          %v2247 = vld [vmem:[#allocation2 + $0x18] sm:$0xff]
          %v2248 = vld [vmem:[#allocation2 + $0x20] sm:$0xff]
          %v2249 = vld [vmem:[#allocation2 + $0x28] sm:$0xff]
          %v2250 = vld [vmem:[#allocation2 + $0x30] sm:$0xff]
          %v2251 = vld [vmem:[#allocation2 + $0x38] sm:$0xff]
          %v2252 = vld [vmem:[#allocation2 + $0x40] sm:$0xff]
          %v2253 = vld [vmem:[#allocation2 + $0x48] sm:$0xff]
          %v2254 = vld [vmem:[#allocation2 + $0x50] sm:$0xff]
          %v2255 = vld [vmem:[#allocation2 + $0x58] sm:$0xff]
          %v2256 = vld [vmem:[#allocation2 + $0x60] sm:$0xff]
          %v2257 = vld [vmem:[#allocation2 + $0x68] sm:$0xff]
          %v2258 = vld [vmem:[#allocation2 + $0x70] sm:$0xff]
          %v2259 = vld [vmem:[#allocation2 + $0x78] sm:$0xff]
          %v2260 = vld [vmem:[#allocation2 + $0x80] sm:$0xff]
          %v2261 = vld [vmem:[#allocation2 + $0x88] sm:$0xff]
          %v2262 = vld [vmem:[#allocation2 + $0x90] sm:$0xff]
          %v2263 = vld [vmem:[#allocation2 + $0x98] sm:$0xff]
          %v2264 = vld [vmem:[#allocation2 + $0xa0] sm:$0xff]
          %v2265 = vld [vmem:[#allocation2 + $0xa8] sm:$0xff]
          %v2266 = vld [vmem:[#allocation2 + $0xb0] sm:$0xff]
          %v2267 = vld [vmem:[#allocation2 + $0xb8] sm:$0xff]
          %v2268 = vld [vmem:[#allocation2 + $0xc0] sm:$0xff]
          %v2269 = vld [vmem:[#allocation2 + $0xc8] sm:$0xff]
          %v2270 = vld [vmem:[#allocation2 + $0xd0] sm:$0xff]
          %v2271 = vld [vmem:[#allocation2 + $0xd8] sm:$0xff]
          %v2272 = vld [vmem:[#allocation2 + $0xe0] sm:$0xff]
          %v2273 = vld [vmem:[#allocation2 + $0xe8] sm:$0xff]
          %v2274 = vld [vmem:[#allocation2 + $0xf0] sm:$0xff]
          %v2275 = vld [vmem:[#allocation2 + $0xf8] sm:$0xff]
          %v2276 = vld [vmem:[%s4] sm:$0x1]
          %v2278 = vlaneseq
          %v2279 = vshrl.u32 %v2278, 7
          %v2280 = vsub.s32 0, %v2279
          %v2281 = vrot.slane %v2276, %v2280
          %v2283 = vadd.f32 %v2244, %v2281
          %v2284 = vadd.f32 %v2245, %v2281
          %v2285 = vadd.f32 %v2246, %v2281
          %v2286 = vadd.f32 %v2247, %v2281
          %v2287 = vadd.f32 %v2248, %v2281
          %v2288 = vadd.f32 %v2249, %v2281
          %v2289 = vadd.f32 %v2250, %v2281
          %v2290 = vadd.f32 %v2251, %v2281
          %v2291 = vadd.f32 %v2252, %v2281
          %v2292 = vadd.f32 %v2253, %v2281
          %v2293 = vadd.f32 %v2254, %v2281
          %v2294 = vadd.f32 %v2255, %v2281
          %v2295 = vadd.f32 %v2256, %v2281
          %v2296 = vadd.f32 %v2257, %v2281
          %v2297 = vadd.f32 %v2258, %v2281
          %v2298 = vadd.f32 %v2259, %v2281
          %v2299 = vadd.f32 %v2260, %v2281
          %v2300 = vadd.f32 %v2261, %v2281
          %v2301 = vadd.f32 %v2262, %v2281
          %v2302 = vadd.f32 %v2263, %v2281
          %v2303 = vadd.f32 %v2264, %v2281
          %v2304 = vadd.f32 %v2265, %v2281
          %v2305 = vadd.f32 %v2266, %v2281
          %v2306 = vadd.f32 %v2267, %v2281
          %v2307 = vadd.f32 %v2268, %v2281
          %v2308 = vadd.f32 %v2269, %v2281
          %v2309 = vadd.f32 %v2270, %v2281
          %v2310 = vadd.f32 %v2271, %v2281
          %v2311 = vadd.f32 %v2272, %v2281
          %v2312 = vadd.f32 %v2273, %v2281
          %v2313 = vadd.f32 %v2274, %v2281
          %v2314 = vadd.f32 %v2275, %v2281
          %2315 = vst [vmem:[%s313] sm:$0xff] %v2283
          %2316 = vst [vmem:[%s313 + $0x8] sm:$0xff] %v2284
          %2317 = vst [vmem:[%s313 + $0x10] sm:$0xff] %v2285
          %2318 = vst [vmem:[%s313 + $0x18] sm:$0xff] %v2286
          %2319 = vst [vmem:[%s313 + $0x20] sm:$0xff] %v2287
          %2320 = vst [vmem:[%s313 + $0x28] sm:$0xff] %v2288
          %2321 = vst [vmem:[%s313 + $0x30] sm:$0xff] %v2289
          %2322 = vst [vmem:[%s313 + $0x38] sm:$0xff] %v2290
          %2323 = vst [vmem:[%s313 + $0x40] sm:$0xff] %v2291
          %2324 = vst [vmem:[%s313 + $0x48] sm:$0xff] %v2292
          %2325 = vst [vmem:[%s313 + $0x50] sm:$0xff] %v2293
          %2326 = vst [vmem:[%s313 + $0x58] sm:$0xff] %v2294
          %2327 = vst [vmem:[%s313 + $0x60] sm:$0xff] %v2295
          %2328 = vst [vmem:[%s313 + $0x68] sm:$0xff] %v2296
          %2329 = vst [vmem:[%s313 + $0x70] sm:$0xff] %v2297
          %2330 = vst [vmem:[%s313 + $0x78] sm:$0xff] %v2298
          %2331 = vst [vmem:[%s313 + $0x80] sm:$0xff] %v2299
          %2332 = vst [vmem:[%s313 + $0x88] sm:$0xff] %v2300
          %2333 = vst [vmem:[%s313 + $0x90] sm:$0xff] %v2301
          %2334 = vst [vmem:[%s313 + $0x98] sm:$0xff] %v2302
          %2335 = vst [vmem:[%s313 + $0xa0] sm:$0xff] %v2303
          %2336 = vst [vmem:[%s313 + $0xa8] sm:$0xff] %v2304
          %2337 = vst [vmem:[%s313 + $0xb0] sm:$0xff] %v2305
          %2338 = vst [vmem:[%s313 + $0xb8] sm:$0xff] %v2306
          %2339 = vst [vmem:[%s313 + $0xc0] sm:$0xff] %v2307
          %2340 = vst [vmem:[%s313 + $0xc8] sm:$0xff] %v2308
          %2341 = vst [vmem:[%s313 + $0xd0] sm:$0xff] %v2309
          %2342 = vst [vmem:[%s313 + $0xd8] sm:$0xff] %v2310
          %2343 = vst [vmem:[%s313 + $0xe0] sm:$0xff] %v2311
          %2344 = vst [vmem:[%s313 + $0xe8] sm:$0xff] %v2312
          %2345 = vst [vmem:[%s313 + $0xf0] sm:$0xff] %v2313
          %2346 = vst [vmem:[%s313 + $0xf8] sm:$0xff] %v2314
        $region60: #{mlp_pallas.1} parent=39 // pred_fallthru
          _
        %s2347 = sand.u32 %s168, 1
        %s2348 = scalar_lea.sflag [#allocation5], %s2347
        %s2349 = sand.u32 %s168, 1
        %s2350 = smul.addr %s2349, 256
        %s2351 = scalar_lea.vmem [#allocation9], %s2350
        // Predicated region
        $region61: #{mlp_pallas.1} parent=39 // pred_check
          %p2352 = pneg %p178
        $region62: #{mlp_pallas.1} parent=39 // pred_check_branch
          %2354 = sbr.rel (%p2352) target = $region64
        $region63: #{mlp_pallas.1} parent=39 // pred_region
          %s2355 = smul.u32 32, %s27
          %s2357 = ssub.s32 4096, 4096
          %2358 = vsyncadd %s2348, %s2357
          %s2359 = smul.addr %s2355, 128
          %s2360 = scalar_lea.hbm %s5, %s2359
          %s2361 = sshll.u32 %s2351, 4
          %s2362 = int_to_ptr.vmem [resolvable:$true] %s2361
          %2367 = dma.vmem_to_hbm [thread:$0]  %s2362, 4096, %s2360, %s2348, 128, 128, 8
        $region64: #{mlp_pallas.1} parent=39 // pred_fallthru
          _
      $region40: #{mlp_pallas.1} parent=5 // pred_fallthru
        _
      %p2368 = scmp.le.s32.totalorder 2, %s18
      // Predicated region
      $region65: #{mlp_pallas.1} parent=5 // pred_check
        %p2369 = pneg %p2368
      $region66: #{mlp_pallas.1} parent=5 // pred_check_branch
        %2371 = sbr.rel (%p2369) target = $region68
      $region67: #{mlp_pallas.1} parent=5 // pred_region
        %s2372 = ssub.s32 %s18, 2
        // Predicated region
        $region69: #{mlp_pallas.1} parent=67 // pred_check
          %p2373 = pneg %p184
        $region70: #{mlp_pallas.1} parent=67 // pred_check_branch
          %2375 = sbr.rel (%p2373) target = $region72
        $region71: #{mlp_pallas.1} parent=67 // pred_region
          %s2376 = sand.u32 %s169, 1
          %s2377 = scalar_lea.sflag [#allocation5], %s2376
          %s2378 = sand.u32 %s169, 1
          %s2379 = smul.addr %s2378, 256
          %s2380 = scalar_lea.vmem [#allocation9], %s2379
          %2381 = dma.done %s2377, 4096
        $region72: #{mlp_pallas.1} parent=67 // pred_fallthru
          _
      $region68: #{mlp_pallas.1} parent=5 // pred_fallthru
        _
    $region6: #{mlp_pallas.1} parent=1 // loop_footer
      %s22 = sadd.s32 1, %s18
    $region7: #{mlp_pallas.1} parent=1 // loop_footer_branch
      %17 = sbr.rel target = $region3
    $region8: #{mlp_pallas.1} parent=1 // loop_exit
      _
    %2382 = vsyncpa [#allocation4], 1
    %s2383 = scalar_lea.sflag [#allocation4], 1
    %2384 = vsyncpa %s2383, 1
    %2385 = vsyncpa [#allocation7], 1
    %2386 = vsyncpa [#allocation5], 1
    %s2387 = scalar_lea.sflag [#allocation5], 1
    %2388 = vsyncpa %s2387, 1

</llo_original>
